<compile_context>
chip_gen: v7x
topology: tpu7x:2x2x1
jax: 0.10.0
libtpu: 0.0.40
codegen_flags: <defaults>
</compile_context>

<pallas_src>
import functools

import jax
import jax.numpy as jnp
from jax.experimental import pallas as pl
from jax.experimental.pallas import tpu as pltpu


_SQRT_HALF = 0.7071067811865476


def _erf_approx(x):
    # Abramowitz & Stegun 7.1.26, |err| < 1.5e-7 -> exact-GELU to f32 accuracy.
    # Only mul/add/div (VPU) + one exp (EUP), so it lowers cleanly in Mosaic.
    a1, a2, a3, a4, a5 = (0.254829592, -0.284496736, 1.421413741,
                          -1.453152027, 1.061405429)
    p = 0.3275911
    ax = jnp.abs(x)
    t = 1.0 / (1.0 + p * ax)
    poly = ((((a5 * t + a4) * t + a3) * t + a2) * t + a1) * t
    y = 1.0 - poly * jnp.exp(-ax * ax)
    return jnp.where(x >= 0, y, -y)


def _gelu_exact(x):
    return 0.5 * x * (1.0 + _erf_approx(x * _SQRT_HALF))


def _dwconv3x3(pad_ref, img, w_ref, b_ref, H, W):
    """Depthwise 3x3 conv, padding=1, channels-last, via zero-padded VMEM scratch."""
    pad_ref[...] = jnp.zeros_like(pad_ref)
    pad_ref[1:H + 1, 1:W + 1, :] = img                      # interior = image
    acc = None
    for dy in range(3):
        for dx in range(3):
            tap = pad_ref[dy:dy + H, dx:dx + W, :] * w_ref[dy * 3 + dx, :]
            acc = tap if acc is None else acc + tap
    return acc + b_ref[...]                                 # (H, W, Ch)


def _mlp_fused_kernel(x_ref, w1_ref, b1_ref, dw1_ref, db1_ref,
                      bns_ref, bnb_ref, dw2_ref, db2_ref,
                      gamma_ref, w2_ref, b2_ref, o_ref, pad_ref, *, H, W):
    N = H * W
    Ch = w1_ref.shape[1]

    # fc1 (MXU, f32 accumulate)
    h = jnp.dot(x_ref[0], w1_ref[...],
                preferred_element_type=jnp.float32) + b1_ref[...]       # (N, Ch)

    # DWConv branch: conv1 -> GELU -> BN(eval) -> conv2, entirely in VMEM
    c1 = _dwconv3x3(pad_ref, h.reshape(H, W, Ch), dw1_ref, db1_ref, H, W)
    a = _gelu_exact(c1)
    bn = a * bns_ref[...] + bnb_ref[...]
    c2 = _dwconv3x3(pad_ref, bn, dw2_ref, db2_ref, H, W)

    # gamma-scaled residual (dropout p=0 -> identity), then fc2 (MXU)
    y = gamma_ref[...] * c2.reshape(N, Ch) + h                          # (N, Ch)
    o_ref[0] = (jnp.dot(y, w2_ref[...], preferred_element_type=jnp.float32)
                + b2_ref[...]).astype(o_ref.dtype)


@functools.partial(jax.jit, static_argnames=("H", "W"))
def mlp_forward(x, w1, b1, dw1, db1, bn_scale, bn_bias, dw2, db2,
                gamma, w2, b2, *, H, W):
    """x: (B, N, C_in) float32 tokens with N == H*W. Returns (B, N, C_out)."""
    B, N, C_in = x.shape
    Ch = w1.shape[1]
    C_out = w2.shape[1]

    # Tiny host-side weight reshapes only (no activation transposes in HBM).
    dw1_9 = jnp.transpose(dw1[:, 0], (1, 2, 0)).reshape(9, Ch)   # [ky*3+kx, c]
    dw2_9 = jnp.transpose(dw2[:, 0], (1, 2, 0)).reshape(9, Ch)
    row = lambda v: v.reshape(1, -1)
    const = lambda b: (0, 0)

    kernel = functools.partial(_mlp_fused_kernel, H=H, W=W)
    return pl.pallas_call(
        kernel,
        out_shape=jax.ShapeDtypeStruct((B, N, C_out), jnp.float32),
        grid=(B,),
        in_specs=[
            pl.BlockSpec((1, N, C_in), lambda b: (b, 0, 0)),   # x
            pl.BlockSpec((C_in, Ch), const),                   # w1
            pl.BlockSpec((1, Ch), const),                      # b1
            pl.BlockSpec((9, Ch), const),                      # dwconv1 weight
            pl.BlockSpec((1, Ch), const),                      # dwconv1 bias
            pl.BlockSpec((1, Ch), const),                      # bn scale (folded)
            pl.BlockSpec((1, Ch), const),                      # bn bias  (folded)
            pl.BlockSpec((9, Ch), const),                      # dwconv2 weight
            pl.BlockSpec((1, Ch), const),                      # dwconv2 bias
            pl.BlockSpec((1, Ch), const),                      # gamma
            pl.BlockSpec((Ch, C_out), const),                  # w2
            pl.BlockSpec((1, C_out), const),                   # b2
        ],
        out_specs=pl.BlockSpec((1, N, C_out), lambda b: (b, 0, 0)),
        scratch_shapes=[pltpu.VMEM((H + 2, W + 2, Ch), jnp.float32)],
        compiler_params=pltpu.CompilerParams(
            dimension_semantics=("parallel",)),
    )(x, w1, row(b1), dw1_9, row(db1), row(bn_scale), row(bn_bias),
      dw2_9, row(db2), row(gamma), w2, row(b2))


def mlp_reference(x, w1, b1, dw1, db1, bn_scale, bn_bias, dw2, db2,
                  gamma, w2, b2, H, W):
    """Pure-JAX reference mirroring the PyTorch Mlp/DWConv forward (eval BN)."""
    B, N, _ = x.shape
    Ch = w1.shape[1]
    with jax.default_matmul_precision("float32"):
        h = jnp.einsum("bnc,cf->bnf", x, w1) + b1                       # fc1
        hm = jnp.transpose(h, (0, 2, 1)).reshape(B, Ch, H, W)           # NCHW
        dn = ("NCHW", "OIHW", "NCHW")
        c1 = jax.lax.conv_general_dilated(
            hm, dw1, (1, 1), "SAME", feature_group_count=Ch,
            dimension_numbers=dn) + db1[None, :, None, None]
        a = jax.nn.gelu(c1, approximate=False)
        bn = a * bn_scale[None, :, None, None] + bn_bias[None, :, None, None]
        c2 = jax.lax.conv_general_dilated(
            bn, dw2, (1, 1), "SAME", feature_group_count=Ch,
            dimension_numbers=dn) + db2[None, :, None, None]
        d = jnp.transpose(c2.reshape(B, Ch, N), (0, 2, 1))              # (B,N,Ch)
        y = gamma * d + h
        return jnp.einsum("bnf,fo->bno", y, w2) + b2                    # fc2


if __name__ == "__main__":
    B, H, W = 2, 8, 8
    N = H * W
    C_in = 32        # in_features (= out_features)
    Ch = 64          # hidden_features
    eps = 1e-5

    key = jax.random.PRNGKey(0)
    ks = jax.random.split(key, 14)
    x = jax.random.normal(ks[0], (B, N, C_in), jnp.float32)
    w1 = jax.random.normal(ks[1], (C_in, Ch), jnp.float32) * 0.1
    b1 = jax.random.normal(ks[2], (Ch,), jnp.float32) * 0.1
    dw1 = jax.random.normal(ks[3], (Ch, 1, 3, 3), jnp.float32) * 0.2
    db1 = jax.random.normal(ks[4], (Ch,), jnp.float32) * 0.1
    bn_w = 1.0 + 0.1 * jax.random.normal(ks[5], (Ch,), jnp.float32)
    bn_b = 0.1 * jax.random.normal(ks[6], (Ch,), jnp.float32)
    bn_mean = 0.1 * jax.random.normal(ks[7], (Ch,), jnp.float32)
    bn_var = 0.5 + jax.random.uniform(ks[8], (Ch,), dtype=jnp.float32)
    dw2 = jax.random.normal(ks[9], (Ch, 1, 3, 3), jnp.float32) * 0.2
    db2 = jax.random.normal(ks[10], (Ch,), jnp.float32) * 0.1
    gamma = 1.0 + 0.1 * jax.random.normal(ks[11], (Ch,), jnp.float32)
    w2 = jax.random.normal(ks[12], (Ch, C_in), jnp.float32) * 0.1
    b2 = jax.random.normal(ks[13], (C_in,), jnp.float32) * 0.1

    # Fold eval-mode BatchNorm into a per-channel scale/bias.
    bn_scale = bn_w / jnp.sqrt(bn_var + eps)
    bn_bias_eff = bn_b - bn_mean * bn_scale

    out = mlp_forward(x, w1, b1, dw1, db1, bn_scale, bn_bias_eff, dw2, db2,
                      gamma, w2, b2, H=H, W=W)
    out = jax.block_until_ready(out)

    ref = mlp_reference(x, w1, b1, dw1, db1, bn_scale, bn_bias_eff, dw2, db2,
                        gamma, w2, b2, H, W)

    assert out.shape == (B, N, C_in), out.shape
    max_err = float(jnp.max(jnp.abs(out - ref)))
    assert jnp.allclose(out, ref, atol=2e-3, rtol=2e-3), max_err

    print("KERNEL_OK")
</pallas_src>

<mosaic_0001>
module attributes {stable_mosaic.version = 11 : i64} {
  func.func @_mlp_fused_kernel(%arg0: i32, %arg1: memref<1x64x32xf32, #tpu.memory_space<vmem>>, %arg2: memref<32x64xf32, #tpu.memory_space<vmem>>, %arg3: memref<1x64xf32, #tpu.memory_space<vmem>>, %arg4: memref<9x64xf32, #tpu.memory_space<vmem>>, %arg5: memref<1x64xf32, #tpu.memory_space<vmem>>, %arg6: memref<1x64xf32, #tpu.memory_space<vmem>>, %arg7: memref<1x64xf32, #tpu.memory_space<vmem>>, %arg8: memref<9x64xf32, #tpu.memory_space<vmem>>, %arg9: memref<1x64xf32, #tpu.memory_space<vmem>>, %arg10: memref<1x64xf32, #tpu.memory_space<vmem>>, %arg11: memref<64x32xf32, #tpu.memory_space<vmem>>, %arg12: memref<1x32xf32, #tpu.memory_space<vmem>>, %arg13: memref<1x64x32xf32, #tpu.memory_space<vmem>>, %arg14: memref<10x10x64xf32, #tpu.memory_space<vmem>>) attributes {dimension_semantics = [#tpu.dimension_semantics<parallel>], iteration_bounds = array<i64: 2>, scalar_prefetch = 0 : i64, scratch_operands = 1 : i64, tpu.core_type = #tpu.core_type<tc>, window_params = [{transform_indices = @transform_0, window_bounds = array<i64: 1, 64, 32>}, {pipeline_mode = #tpu.pipeline_mode<synchronous>, transform_indices = @transform_1, window_bounds = array<i64: 32, 64>}, {pipeline_mode = #tpu.pipeline_mode<synchronous>, transform_indices = @transform_2, window_bounds = array<i64: 1, 64>}, {pipeline_mode = #tpu.pipeline_mode<synchronous>, transform_indices = @transform_3, window_bounds = array<i64: 9, 64>}, {pipeline_mode = #tpu.pipeline_mode<synchronous>, transform_indices = @transform_4, window_bounds = array<i64: 1, 64>}, {pipeline_mode = #tpu.pipeline_mode<synchronous>, transform_indices = @transform_5, window_bounds = array<i64: 1, 64>}, {pipeline_mode = #tpu.pipeline_mode<synchronous>, transform_indices = @transform_6, window_bounds = array<i64: 1, 64>}, {pipeline_mode = #tpu.pipeline_mode<synchronous>, transform_indices = @transform_7, window_bounds = array<i64: 9, 64>}, {pipeline_mode = #tpu.pipeline_mode<synchronous>, transform_indices = @transform_8, window_bounds = array<i64: 1, 64>}, {pipeline_mode = #tpu.pipeline_mode<synchronous>, transform_indices = @transform_9, window_bounds = array<i64: 1, 64>}, {pipeline_mode = #tpu.pipeline_mode<synchronous>, transform_indices = @transform_10, window_bounds = array<i64: 64, 32>}, {pipeline_mode = #tpu.pipeline_mode<synchronous>, transform_indices = @transform_11, window_bounds = array<i64: 1, 32>}, {transform_indices = @transform_12, window_bounds = array<i64: 1, 64, 32>}]} {
    %c0 = arith.constant 0 : index
    %c0_0 = arith.constant 0 : index
    %c0_1 = arith.constant 0 : index
    %0 = vector.load %arg1[%c0, %c0_0, %c0_1] : memref<1x64x32xf32, #tpu.memory_space<vmem>>, vector<1x64x32xf32>
    %1 = vector.shape_cast %0 : vector<1x64x32xf32> to vector<64x32xf32>
    %c0_2 = arith.constant 0 : index
    %c0_3 = arith.constant 0 : index
    %2 = vector.load %arg2[%c0_2, %c0_3] : memref<32x64xf32, #tpu.memory_space<vmem>>, vector<32x64xf32>
    %cst = arith.constant dense<0.000000e+00> : vector<64x64xf32>
    %3 = tpu.matmul %1, %2, %cst {dimension_numbers = #tpu.dot_dimension_numbers<[1], [0], [0], [1], [0, 0, 1, 1], [], []>} : vector<64x32xf32>, vector<32x64xf32>, vector<64x64xf32> -> vector<64x64xf32>
    %c0_4 = arith.constant 0 : index
    %c0_5 = arith.constant 0 : index
    %4 = vector.load %arg3[%c0_4, %c0_5] : memref<1x64xf32, #tpu.memory_space<vmem>>, vector<1x64xf32>
    %5 = vector.broadcast %4 : vector<1x64xf32> to vector<64x64xf32>
    %6 = arith.addf %3, %5 : vector<64x64xf32>
    %7 = vector.shape_cast %6 : vector<64x64xf32> to vector<8x8x64xf32>
    %cst_6 = arith.constant 0.000000e+00 : f32
    %8 = vector.broadcast %cst_6 : f32 to vector<10x10x64xf32>
    %c0_7 = arith.constant 0 : index
    %c0_8 = arith.constant 0 : index
    %c0_9 = arith.constant 0 : index
    %9 = vector.load %arg14[%c0_7, %c0_8, %c0_9] : memref<10x10x64xf32, #tpu.memory_space<vmem>>, vector<10x10x64xf32>
    tpu.vector_store %arg14[%c0_7, %c0_8, %c0_9], %8 {strides = array<i32>} : memref<10x10x64xf32, #tpu.memory_space<vmem>>, vector<10x10x64xf32>,
    %c1 = arith.constant 1 : index
    %c1_10 = arith.constant 1 : index
    %c0_11 = arith.constant 0 : index
    %10 = vector.load %arg14[%c1, %c1_10, %c0_11] : memref<10x10x64xf32, #tpu.memory_space<vmem>>, vector<8x8x64xf32>
    tpu.vector_store %arg14[%c1, %c1_10, %c0_11], %7 {strides = array<i32>} : memref<10x10x64xf32, #tpu.memory_space<vmem>>, vector<8x8x64xf32>,
    %c0_12 = arith.constant 0 : index
    %c0_13 = arith.constant 0 : index
    %c0_14 = arith.constant 0 : index
    %11 = vector.load %arg14[%c0_12, %c0_13, %c0_14] : memref<10x10x64xf32, #tpu.memory_space<vmem>>, vector<8x8x64xf32>
    %c0_15 = arith.constant 0 : index
    %c0_16 = arith.constant 0 : index
    %12 = vector.load %arg4[%c0_15, %c0_16] : memref<9x64xf32, #tpu.memory_space<vmem>>, vector<1x64xf32>
    %13 = vector.shape_cast %12 : vector<1x64xf32> to vector<64xf32>
    %14 = vector.shape_cast %13 : vector<64xf32> to vector<1x1x64xf32>
    %15 = vector.broadcast %14 : vector<1x1x64xf32> to vector<8x8x64xf32>
    %16 = arith.mulf %11, %15 : vector<8x8x64xf32>
    %c0_17 = arith.constant 0 : index
    %c1_18 = arith.constant 1 : index
    %c0_19 = arith.constant 0 : index
    %17 = vector.load %arg14[%c0_17, %c1_18, %c0_19] : memref<10x10x64xf32, #tpu.memory_space<vmem>>, vector<8x8x64xf32>
    %c1_20 = arith.constant 1 : index
    %c0_21 = arith.constant 0 : index
    %18 = vector.load %arg4[%c1_20, %c0_21] : memref<9x64xf32, #tpu.memory_space<vmem>>, vector<1x64xf32>
    %19 = vector.shape_cast %18 : vector<1x64xf32> to vector<64xf32>
    %20 = vector.shape_cast %19 : vector<64xf32> to vector<1x1x64xf32>
    %21 = vector.broadcast %20 : vector<1x1x64xf32> to vector<8x8x64xf32>
    %22 = arith.mulf %17, %21 : vector<8x8x64xf32>
    %23 = arith.addf %16, %22 : vector<8x8x64xf32>
    %c0_22 = arith.constant 0 : index
    %c2 = arith.constant 2 : index
    %c0_23 = arith.constant 0 : index
    %24 = vector.load %arg14[%c0_22, %c2, %c0_23] : memref<10x10x64xf32, #tpu.memory_space<vmem>>, vector<8x8x64xf32>
    %c2_24 = arith.constant 2 : index
    %c0_25 = arith.constant 0 : index
    %25 = vector.load %arg4[%c2_24, %c0_25] : memref<9x64xf32, #tpu.memory_space<vmem>>, vector<1x64xf32>
    %26 = vector.shape_cast %25 : vector<1x64xf32> to vector<64xf32>
    %27 = vector.shape_cast %26 : vector<64xf32> to vector<1x1x64xf32>
    %28 = vector.broadcast %27 : vector<1x1x64xf32> to vector<8x8x64xf32>
    %29 = arith.mulf %24, %28 : vector<8x8x64xf32>
    %30 = arith.addf %23, %29 : vector<8x8x64xf32>
    %c1_26 = arith.constant 1 : index
    %c0_27 = arith.constant 0 : index
    %c0_28 = arith.constant 0 : index
    %31 = vector.load %arg14[%c1_26, %c0_27, %c0_28] : memref<10x10x64xf32, #tpu.memory_space<vmem>>, vector<8x8x64xf32>
    %c3 = arith.constant 3 : index
    %c0_29 = arith.constant 0 : index
    %32 = vector.load %arg4[%c3, %c0_29] : memref<9x64xf32, #tpu.memory_space<vmem>>, vector<1x64xf32>
    %33 = vector.shape_cast %32 : vector<1x64xf32> to vector<64xf32>
    %34 = vector.shape_cast %33 : vector<64xf32> to vector<1x1x64xf32>
    %35 = vector.broadcast %34 : vector<1x1x64xf32> to vector<8x8x64xf32>
    %36 = arith.mulf %31, %35 : vector<8x8x64xf32>
    %37 = arith.addf %30, %36 : vector<8x8x64xf32>
    %c1_30 = arith.constant 1 : index
    %c1_31 = arith.constant 1 : index
    %c0_32 = arith.constant 0 : index
    %38 = vector.load %arg14[%c1_30, %c1_31, %c0_32] : memref<10x10x64xf32, #tpu.memory_space<vmem>>, vector<8x8x64xf32>
    %c4 = arith.constant 4 : index
    %c0_33 = arith.constant 0 : index
    %39 = vector.load %arg4[%c4, %c0_33] : memref<9x64xf32, #tpu.memory_space<vmem>>, vector<1x64xf32>
    %40 = vector.shape_cast %39 : vector<1x64xf32> to vector<64xf32>
    %41 = vector.shape_cast %40 : vector<64xf32> to vector<1x1x64xf32>
    %42 = vector.broadcast %41 : vector<1x1x64xf32> to vector<8x8x64xf32>
    %43 = arith.mulf %38, %42 : vector<8x8x64xf32>
    %44 = arith.addf %37, %43 : vector<8x8x64xf32>
    %c1_34 = arith.constant 1 : index
    %c2_35 = arith.constant 2 : index
    %c0_36 = arith.constant 0 : index
    %45 = vector.load %arg14[%c1_34, %c2_35, %c0_36] : memref<10x10x64xf32, #tpu.memory_space<vmem>>, vector<8x8x64xf32>
    %c5 = arith.constant 5 : index
    %c0_37 = arith.constant 0 : index
    %46 = vector.load %arg4[%c5, %c0_37] : memref<9x64xf32, #tpu.memory_space<vmem>>, vector<1x64xf32>
    %47 = vector.shape_cast %46 : vector<1x64xf32> to vector<64xf32>
    %48 = vector.shape_cast %47 : vector<64xf32> to vector<1x1x64xf32>
    %49 = vector.broadcast %48 : vector<1x1x64xf32> to vector<8x8x64xf32>
    %50 = arith.mulf %45, %49 : vector<8x8x64xf32>
    %51 = arith.addf %44, %50 : vector<8x8x64xf32>
    %c2_38 = arith.constant 2 : index
    %c0_39 = arith.constant 0 : index
    %c0_40 = arith.constant 0 : index
    %52 = vector.load %arg14[%c2_38, %c0_39, %c0_40] : memref<10x10x64xf32, #tpu.memory_space<vmem>>, vector<8x8x64xf32>
    %c6 = arith.constant 6 : index
    %c0_41 = arith.constant 0 : index
    %53 = vector.load %arg4[%c6, %c0_41] : memref<9x64xf32, #tpu.memory_space<vmem>>, vector<1x64xf32>
    %54 = vector.shape_cast %53 : vector<1x64xf32> to vector<64xf32>
    %55 = vector.shape_cast %54 : vector<64xf32> to vector<1x1x64xf32>
    %56 = vector.broadcast %55 : vector<1x1x64xf32> to vector<8x8x64xf32>
    %57 = arith.mulf %52, %56 : vector<8x8x64xf32>
    %58 = arith.addf %51, %57 : vector<8x8x64xf32>
    %c2_42 = arith.constant 2 : index
    %c1_43 = arith.constant 1 : index
    %c0_44 = arith.constant 0 : index
    %59 = vector.load %arg14[%c2_42, %c1_43, %c0_44] : memref<10x10x64xf32, #tpu.memory_space<vmem>>, vector<8x8x64xf32>
    %c7 = arith.constant 7 : index
    %c0_45 = arith.constant 0 : index
    %60 = vector.load %arg4[%c7, %c0_45] : memref<9x64xf32, #tpu.memory_space<vmem>>, vector<1x64xf32>
    %61 = vector.shape_cast %60 : vector<1x64xf32> to vector<64xf32>
    %62 = vector.shape_cast %61 : vector<64xf32> to vector<1x1x64xf32>
    %63 = vector.broadcast %62 : vector<1x1x64xf32> to vector<8x8x64xf32>
    %64 = arith.mulf %59, %63 : vector<8x8x64xf32>
    %65 = arith.addf %58, %64 : vector<8x8x64xf32>
    %c2_46 = arith.constant 2 : index
    %c2_47 = arith.constant 2 : index
    %c0_48 = arith.constant 0 : index
    %66 = vector.load %arg14[%c2_46, %c2_47, %c0_48] : memref<10x10x64xf32, #tpu.memory_space<vmem>>, vector<8x8x64xf32>
    %c8 = arith.constant 8 : index
    %c0_49 = arith.constant 0 : index
    %67 = vector.load %arg4[%c8, %c0_49] : memref<9x64xf32, #tpu.memory_space<vmem>>, vector<1x64xf32>
    %68 = vector.shape_cast %67 : vector<1x64xf32> to vector<64xf32>
    %69 = vector.shape_cast %68 : vector<64xf32> to vector<1x1x64xf32>
    %70 = vector.broadcast %69 : vector<1x1x64xf32> to vector<8x8x64xf32>
    %71 = arith.mulf %66, %70 : vector<8x8x64xf32>
    %72 = arith.addf %65, %71 : vector<8x8x64xf32>
    %c0_50 = arith.constant 0 : index
    %c0_51 = arith.constant 0 : index
    %73 = vector.load %arg5[%c0_50, %c0_51] : memref<1x64xf32, #tpu.memory_space<vmem>>, vector<1x64xf32>
    %74 = vector.shape_cast %73 : vector<1x64xf32> to vector<1x1x64xf32>
    %75 = vector.broadcast %74 : vector<1x1x64xf32> to vector<8x8x64xf32>
    %76 = arith.addf %72, %75 : vector<8x8x64xf32>
    %cst_52 = arith.constant 5.000000e-01 : f32
    %77 = vector.broadcast %cst_52 : f32 to vector<8x8x64xf32>
    %78 = arith.mulf %77, %76 : vector<8x8x64xf32>
    %cst_53 = arith.constant 0.707106769 : f32
    %79 = vector.broadcast %cst_53 : f32 to vector<8x8x64xf32>
    %80 = arith.mulf %76, %79 : vector<8x8x64xf32>
    %81 = math.absf %80 : vector<8x8x64xf32>
    %cst_54 = arith.constant 0.327591091 : f32
    %82 = vector.broadcast %cst_54 : f32 to vector<8x8x64xf32>
    %83 = arith.mulf %82, %81 : vector<8x8x64xf32>
    %cst_55 = arith.constant 1.000000e+00 : f32
    %84 = vector.broadcast %cst_55 : f32 to vector<8x8x64xf32>
    %85 = arith.addf %84, %83 : vector<8x8x64xf32>
    %cst_56 = arith.constant 1.000000e+00 : f32
    %86 = vector.broadcast %cst_56 : f32 to vector<8x8x64xf32>
    %87 = arith.divf %86, %85 : vector<8x8x64xf32>
    %cst_57 = arith.constant 1.06140542 : f32
    %88 = vector.broadcast %cst_57 : f32 to vector<8x8x64xf32>
    %89 = arith.mulf %88, %87 : vector<8x8x64xf32>
    %cst_58 = arith.constant -1.45315206 : f32
    %90 = vector.broadcast %cst_58 : f32 to vector<8x8x64xf32>
    %91 = arith.addf %89, %90 : vector<8x8x64xf32>
    %92 = arith.mulf %91, %87 : vector<8x8x64xf32>
    %cst_59 = arith.constant 1.42141378 : f32
    %93 = vector.broadcast %cst_59 : f32 to vector<8x8x64xf32>
    %94 = arith.addf %92, %93 : vector<8x8x64xf32>
    %95 = arith.mulf %94, %87 : vector<8x8x64xf32>
    %cst_60 = arith.constant -0.284496725 : f32
    %96 = vector.broadcast %cst_60 : f32 to vector<8x8x64xf32>
    %97 = arith.addf %95, %96 : vector<8x8x64xf32>
    %98 = arith.mulf %97, %87 : vector<8x8x64xf32>
    %cst_61 = arith.constant 0.254829586 : f32
    %99 = vector.broadcast %cst_61 : f32 to vector<8x8x64xf32>
    %100 = arith.addf %98, %99 : vector<8x8x64xf32>
    %101 = arith.mulf %100, %87 : vector<8x8x64xf32>
    %cst_62 = arith.constant 0.000000e+00 : f32
    %102 = vector.broadcast %cst_62 : f32 to vector<8x8x64xf32>
    %103 = arith.subf %102, %81 : vector<8x8x64xf32>
    %104 = arith.mulf %103, %81 : vector<8x8x64xf32>
    %105 = math.exp %104 : vector<8x8x64xf32>
    %106 = arith.mulf %101, %105 : vector<8x8x64xf32>
    %cst_63 = arith.constant 1.000000e+00 : f32
    %107 = vector.broadcast %cst_63 : f32 to vector<8x8x64xf32>
    %108 = arith.subf %107, %106 : vector<8x8x64xf32>
    %cst_64 = arith.constant 0.000000e+00 : f32
    %109 = vector.broadcast %cst_64 : f32 to vector<8x8x64xf32>
    %110 = arith.cmpf oge, %80, %109 : vector<8x8x64xf32>
    %cst_65 = arith.constant 0.000000e+00 : f32
    %111 = vector.broadcast %cst_65 : f32 to vector<8x8x64xf32>
    %112 = arith.subf %111, %108 : vector<8x8x64xf32>
    %113 = arith.select %110, %108, %112 : vector<8x8x64xi1>, vector<8x8x64xf32>
    %cst_66 = arith.constant 1.000000e+00 : f32
    %114 = vector.broadcast %cst_66 : f32 to vector<8x8x64xf32>
    %115 = arith.addf %114, %113 : vector<8x8x64xf32>
    %116 = arith.mulf %78, %115 : vector<8x8x64xf32>
    %c0_67 = arith.constant 0 : index
    %c0_68 = arith.constant 0 : index
    %117 = vector.load %arg6[%c0_67, %c0_68] : memref<1x64xf32, #tpu.memory_space<vmem>>, vector<1x64xf32>
    %118 = vector.shape_cast %117 : vector<1x64xf32> to vector<1x1x64xf32>
    %119 = vector.broadcast %118 : vector<1x1x64xf32> to vector<8x8x64xf32>
    %120 = arith.mulf %116, %119 : vector<8x8x64xf32>
    %c0_69 = arith.constant 0 : index
    %c0_70 = arith.constant 0 : index
    %121 = vector.load %arg7[%c0_69, %c0_70] : memref<1x64xf32, #tpu.memory_space<vmem>>, vector<1x64xf32>
    %122 = vector.shape_cast %121 : vector<1x64xf32> to vector<1x1x64xf32>
    %123 = vector.broadcast %122 : vector<1x1x64xf32> to vector<8x8x64xf32>
    %124 = arith.addf %120, %123 : vector<8x8x64xf32>
    %cst_71 = arith.constant 0.000000e+00 : f32
    %125 = vector.broadcast %cst_71 : f32 to vector<10x10x64xf32>
    %c0_72 = arith.constant 0 : index
    %c0_73 = arith.constant 0 : index
    %c0_74 = arith.constant 0 : index
    %126 = vector.load %arg14[%c0_72, %c0_73, %c0_74] : memref<10x10x64xf32, #tpu.memory_space<vmem>>, vector<10x10x64xf32>
    tpu.vector_store %arg14[%c0_72, %c0_73, %c0_74], %125 {strides = array<i32>} : memref<10x10x64xf32, #tpu.memory_space<vmem>>, vector<10x10x64xf32>,
    %c1_75 = arith.constant 1 : index
    %c1_76 = arith.constant 1 : index
    %c0_77 = arith.constant 0 : index
    %127 = vector.load %arg14[%c1_75, %c1_76, %c0_77] : memref<10x10x64xf32, #tpu.memory_space<vmem>>, vector<8x8x64xf32>
    tpu.vector_store %arg14[%c1_75, %c1_76, %c0_77], %124 {strides = array<i32>} : memref<10x10x64xf32, #tpu.memory_space<vmem>>, vector<8x8x64xf32>,
    %c0_78 = arith.constant 0 : index
    %c0_79 = arith.constant 0 : index
    %c0_80 = arith.constant 0 : index
    %128 = vector.load %arg14[%c0_78, %c0_79, %c0_80] : memref<10x10x64xf32, #tpu.memory_space<vmem>>, vector<8x8x64xf32>
    %c0_81 = arith.constant 0 : index
    %c0_82 = arith.constant 0 : index
    %129 = vector.load %arg8[%c0_81, %c0_82] : memref<9x64xf32, #tpu.memory_space<vmem>>, vector<1x64xf32>
    %130 = vector.shape_cast %129 : vector<1x64xf32> to vector<64xf32>
    %131 = vector.shape_cast %130 : vector<64xf32> to vector<1x1x64xf32>
    %132 = vector.broadcast %131 : vector<1x1x64xf32> to vector<8x8x64xf32>
    %133 = arith.mulf %128, %132 : vector<8x8x64xf32>
    %c0_83 = arith.constant 0 : index
    %c1_84 = arith.constant 1 : index
    %c0_85 = arith.constant 0 : index
    %134 = vector.load %arg14[%c0_83, %c1_84, %c0_85] : memref<10x10x64xf32, #tpu.memory_space<vmem>>, vector<8x8x64xf32>
    %c1_86 = arith.constant 1 : index
    %c0_87 = arith.constant 0 : index
    %135 = vector.load %arg8[%c1_86, %c0_87] : memref<9x64xf32, #tpu.memory_space<vmem>>, vector<1x64xf32>
    %136 = vector.shape_cast %135 : vector<1x64xf32> to vector<64xf32>
    %137 = vector.shape_cast %136 : vector<64xf32> to vector<1x1x64xf32>
    %138 = vector.broadcast %137 : vector<1x1x64xf32> to vector<8x8x64xf32>
    %139 = arith.mulf %134, %138 : vector<8x8x64xf32>
    %140 = arith.addf %133, %139 : vector<8x8x64xf32>
    %c0_88 = arith.constant 0 : index
    %c2_89 = arith.constant 2 : index
    %c0_90 = arith.constant 0 : index
    %141 = vector.load %arg14[%c0_88, %c2_89, %c0_90] : memref<10x10x64xf32, #tpu.memory_space<vmem>>, vector<8x8x64xf32>
    %c2_91 = arith.constant 2 : index
    %c0_92 = arith.constant 0 : index
    %142 = vector.load %arg8[%c2_91, %c0_92] : memref<9x64xf32, #tpu.memory_space<vmem>>, vector<1x64xf32>
    %143 = vector.shape_cast %142 : vector<1x64xf32> to vector<64xf32>
    %144 = vector.shape_cast %143 : vector<64xf32> to vector<1x1x64xf32>
    %145 = vector.broadcast %144 : vector<1x1x64xf32> to vector<8x8x64xf32>
    %146 = arith.mulf %141, %145 : vector<8x8x64xf32>
    %147 = arith.addf %140, %146 : vector<8x8x64xf32>
    %c1_93 = arith.constant 1 : index
    %c0_94 = arith.constant 0 : index
    %c0_95 = arith.constant 0 : index
    %148 = vector.load %arg14[%c1_93, %c0_94, %c0_95] : memref<10x10x64xf32, #tpu.memory_space<vmem>>, vector<8x8x64xf32>
    %c3_96 = arith.constant 3 : index
    %c0_97 = arith.constant 0 : index
    %149 = vector.load %arg8[%c3_96, %c0_97] : memref<9x64xf32, #tpu.memory_space<vmem>>, vector<1x64xf32>
    %150 = vector.shape_cast %149 : vector<1x64xf32> to vector<64xf32>
    %151 = vector.shape_cast %150 : vector<64xf32> to vector<1x1x64xf32>
    %152 = vector.broadcast %151 : vector<1x1x64xf32> to vector<8x8x64xf32>
    %153 = arith.mulf %148, %152 : vector<8x8x64xf32>
    %154 = arith.addf %147, %153 : vector<8x8x64xf32>
    %c1_98 = arith.constant 1 : index
    %c1_99 = arith.constant 1 : index
    %c0_100 = arith.constant 0 : index
    %155 = vector.load %arg14[%c1_98, %c1_99, %c0_100] : memref<10x10x64xf32, #tpu.memory_space<vmem>>, vector<8x8x64xf32>
    %c4_101 = arith.constant 4 : index
    %c0_102 = arith.constant 0 : index
    %156 = vector.load %arg8[%c4_101, %c0_102] : memref<9x64xf32, #tpu.memory_space<vmem>>, vector<1x64xf32>
    %157 = vector.shape_cast %156 : vector<1x64xf32> to vector<64xf32>
    %158 = vector.shape_cast %157 : vector<64xf32> to vector<1x1x64xf32>
    %159 = vector.broadcast %158 : vector<1x1x64xf32> to vector<8x8x64xf32>
    %160 = arith.mulf %155, %159 : vector<8x8x64xf32>
    %161 = arith.addf %154, %160 : vector<8x8x64xf32>
    %c1_103 = arith.constant 1 : index
    %c2_104 = arith.constant 2 : index
    %c0_105 = arith.constant 0 : index
    %162 = vector.load %arg14[%c1_103, %c2_104, %c0_105] : memref<10x10x64xf32, #tpu.memory_space<vmem>>, vector<8x8x64xf32>
    %c5_106 = arith.constant 5 : index
    %c0_107 = arith.constant 0 : index
    %163 = vector.load %arg8[%c5_106, %c0_107] : memref<9x64xf32, #tpu.memory_space<vmem>>, vector<1x64xf32>
    %164 = vector.shape_cast %163 : vector<1x64xf32> to vector<64xf32>
    %165 = vector.shape_cast %164 : vector<64xf32> to vector<1x1x64xf32>
    %166 = vector.broadcast %165 : vector<1x1x64xf32> to vector<8x8x64xf32>
    %167 = arith.mulf %162, %166 : vector<8x8x64xf32>
    %168 = arith.addf %161, %167 : vector<8x8x64xf32>
    %c2_108 = arith.constant 2 : index
    %c0_109 = arith.constant 0 : index
    %c0_110 = arith.constant 0 : index
    %169 = vector.load %arg14[%c2_108, %c0_109, %c0_110] : memref<10x10x64xf32, #tpu.memory_space<vmem>>, vector<8x8x64xf32>
    %c6_111 = arith.constant 6 : index
    %c0_112 = arith.constant 0 : index
    %170 = vector.load %arg8[%c6_111, %c0_112] : memref<9x64xf32, #tpu.memory_space<vmem>>, vector<1x64xf32>
    %171 = vector.shape_cast %170 : vector<1x64xf32> to vector<64xf32>
    %172 = vector.shape_cast %171 : vector<64xf32> to vector<1x1x64xf32>
    %173 = vector.broadcast %172 : vector<1x1x64xf32> to vector<8x8x64xf32>
    %174 = arith.mulf %169, %173 : vector<8x8x64xf32>
    %175 = arith.addf %168, %174 : vector<8x8x64xf32>
    %c2_113 = arith.constant 2 : index
    %c1_114 = arith.constant 1 : index
    %c0_115 = arith.constant 0 : index
    %176 = vector.load %arg14[%c2_113, %c1_114, %c0_115] : memref<10x10x64xf32, #tpu.memory_space<vmem>>, vector<8x8x64xf32>
    %c7_116 = arith.constant 7 : index
    %c0_117 = arith.constant 0 : index
    %177 = vector.load %arg8[%c7_116, %c0_117] : memref<9x64xf32, #tpu.memory_space<vmem>>, vector<1x64xf32>
    %178 = vector.shape_cast %177 : vector<1x64xf32> to vector<64xf32>
    %179 = vector.shape_cast %178 : vector<64xf32> to vector<1x1x64xf32>
    %180 = vector.broadcast %179 : vector<1x1x64xf32> to vector<8x8x64xf32>
    %181 = arith.mulf %176, %180 : vector<8x8x64xf32>
    %182 = arith.addf %175, %181 : vector<8x8x64xf32>
    %c2_118 = arith.constant 2 : index
    %c2_119 = arith.constant 2 : index
    %c0_120 = arith.constant 0 : index
    %183 = vector.load %arg14[%c2_118, %c2_119, %c0_120] : memref<10x10x64xf32, #tpu.memory_space<vmem>>, vector<8x8x64xf32>
    %c8_121 = arith.constant 8 : index
    %c0_122 = arith.constant 0 : index
    %184 = vector.load %arg8[%c8_121, %c0_122] : memref<9x64xf32, #tpu.memory_space<vmem>>, vector<1x64xf32>
    %185 = vector.shape_cast %184 : vector<1x64xf32> to vector<64xf32>
    %186 = vector.shape_cast %185 : vector<64xf32> to vector<1x1x64xf32>
    %187 = vector.broadcast %186 : vector<1x1x64xf32> to vector<8x8x64xf32>
    %188 = arith.mulf %183, %187 : vector<8x8x64xf32>
    %189 = arith.addf %182, %188 : vector<8x8x64xf32>
    %c0_123 = arith.constant 0 : index
    %c0_124 = arith.constant 0 : index
    %190 = vector.load %arg9[%c0_123, %c0_124] : memref<1x64xf32, #tpu.memory_space<vmem>>, vector<1x64xf32>
    %191 = vector.shape_cast %190 : vector<1x64xf32> to vector<1x1x64xf32>
    %192 = vector.broadcast %191 : vector<1x1x64xf32> to vector<8x8x64xf32>
    %193 = arith.addf %189, %192 : vector<8x8x64xf32>
    %c0_125 = arith.constant 0 : index
    %c0_126 = arith.constant 0 : index
    %194 = vector.load %arg10[%c0_125, %c0_126] : memref<1x64xf32, #tpu.memory_space<vmem>>, vector<1x64xf32>
    %195 = vector.shape_cast %193 : vector<8x8x64xf32> to vector<64x64xf32>
    %196 = vector.broadcast %194 : vector<1x64xf32> to vector<64x64xf32>
    %197 = arith.mulf %196, %195 : vector<64x64xf32>
    %198 = arith.addf %197, %6 : vector<64x64xf32>
    %c0_127 = arith.constant 0 : index
    %c0_128 = arith.constant 0 : index
    %199 = vector.load %arg11[%c0_127, %c0_128] : memref<64x32xf32, #tpu.memory_space<vmem>>, vector<64x32xf32>
    %cst_129 = arith.constant dense<0.000000e+00> : vector<64x32xf32>
    %200 = tpu.matmul %198, %199, %cst_129 {dimension_numbers = #tpu.dot_dimension_numbers<[1], [0], [0], [1], [0, 0, 1, 1], [], []>} : vector<64x64xf32>, vector<64x32xf32>, vector<64x32xf32> -> vector<64x32xf32>
    %c0_130 = arith.constant 0 : index
    %c0_131 = arith.constant 0 : index
    %201 = vector.load %arg12[%c0_130, %c0_131] : memref<1x32xf32, #tpu.memory_space<vmem>>, vector<1x32xf32>
    %202 = vector.broadcast %201 : vector<1x32xf32> to vector<64x32xf32>
    %203 = arith.addf %200, %202 : vector<64x32xf32>
    %c0_132 = arith.constant 0 : index
    %c0_133 = arith.constant 0 : index
    %c0_134 = arith.constant 0 : index
    %204 = vector.load %arg13[%c0_132, %c0_133, %c0_134] : memref<1x64x32xf32, #tpu.memory_space<vmem>>, vector<1x64x32xf32>
    %205 = vector.shape_cast %204 : vector<1x64x32xf32> to vector<64x32xf32>
    %206 = vector.shape_cast %203 : vector<64x32xf32> to vector<1x64x32xf32>
    tpu.vector_store %arg13[%c0_132, %c0_133, %c0_134], %206 {strides = array<i32>} : memref<1x64x32xf32, #tpu.memory_space<vmem>>, vector<1x64x32xf32>,
    return
  }
  func.func @transform_0(%arg0: i32) -> (i32, i32, i32) {
    %c0_i32 = arith.constant 0 : i32
    %c0_i32_0 = arith.constant 0 : i32
    %c0_i32_1 = arith.constant 0 : i32
    return %arg0, %c0_i32, %c0_i32_0 : i32, i32, i32
  }
  func.func @transform_1(%arg0: i32) -> (i32, i32) {
    %c0_i32 = arith.constant 0 : i32
    %c0_i32_0 = arith.constant 0 : i32
    %c0_i32_1 = arith.constant 0 : i32
    return %c0_i32, %c0_i32_0 : i32, i32
  }
  func.func @transform_2(%arg0: i32) -> (i32, i32) {
    %c0_i32 = arith.constant 0 : i32
    %c0_i32_0 = arith.constant 0 : i32
    %c0_i32_1 = arith.constant 0 : i32
    return %c0_i32, %c0_i32_0 : i32, i32
  }
  func.func @transform_3(%arg0: i32) -> (i32, i32) {
    %c0_i32 = arith.constant 0 : i32
    %c0_i32_0 = arith.constant 0 : i32
    %c0_i32_1 = arith.constant 0 : i32
    return %c0_i32, %c0_i32_0 : i32, i32
  }
  func.func @transform_4(%arg0: i32) -> (i32, i32) {
    %c0_i32 = arith.constant 0 : i32
    %c0_i32_0 = arith.constant 0 : i32
    %c0_i32_1 = arith.constant 0 : i32
    return %c0_i32, %c0_i32_0 : i32, i32
  }
  func.func @transform_5(%arg0: i32) -> (i32, i32) {
    %c0_i32 = arith.constant 0 : i32
    %c0_i32_0 = arith.constant 0 : i32
    %c0_i32_1 = arith.constant 0 : i32
    return %c0_i32, %c0_i32_0 : i32, i32
  }
  func.func @transform_6(%arg0: i32) -> (i32, i32) {
    %c0_i32 = arith.constant 0 : i32
    %c0_i32_0 = arith.constant 0 : i32
    %c0_i32_1 = arith.constant 0 : i32
    return %c0_i32, %c0_i32_0 : i32, i32
  }
  func.func @transform_7(%arg0: i32) -> (i32, i32) {
    %c0_i32 = arith.constant 0 : i32
    %c0_i32_0 = arith.constant 0 : i32
    %c0_i32_1 = arith.constant 0 : i32
    return %c0_i32, %c0_i32_0 : i32, i32
  }
  func.func @transform_8(%arg0: i32) -> (i32, i32) {
    %c0_i32 = arith.constant 0 : i32
    %c0_i32_0 = arith.constant 0 : i32
    %c0_i32_1 = arith.constant 0 : i32
    return %c0_i32, %c0_i32_0 : i32, i32
  }
  func.func @transform_9(%arg0: i32) -> (i32, i32) {
    %c0_i32 = arith.constant 0 : i32
    %c0_i32_0 = arith.constant 0 : i32
    %c0_i32_1 = arith.constant 0 : i32
    return %c0_i32, %c0_i32_0 : i32, i32
  }
  func.func @transform_10(%arg0: i32) -> (i32, i32) {
    %c0_i32 = arith.constant 0 : i32
    %c0_i32_0 = arith.constant 0 : i32
    %c0_i32_1 = arith.constant 0 : i32
    return %c0_i32, %c0_i32_0 : i32, i32
  }
  func.func @transform_11(%arg0: i32) -> (i32, i32) {
    %c0_i32 = arith.constant 0 : i32
    %c0_i32_0 = arith.constant 0 : i32
    %c0_i32_1 = arith.constant 0 : i32
    return %c0_i32, %c0_i32_0 : i32, i32
  }
  func.func @transform_12(%arg0: i32) -> (i32, i32, i32) {
    %c0_i32 = arith.constant 0 : i32
    %c0_i32_0 = arith.constant 0 : i32
    %c0_i32_1 = arith.constant 0 : i32
    return %arg0, %c0_i32, %c0_i32_0 : i32, i32, i32
  }
}

</mosaic_0001>

<llo_original>
// kernel: mlp_forward.1
$region0: #{mlp_forward.1}
  #allocation0 [shape = 'u32[]', space=smem, size = 0x4, offset = 0x4, fixed_abs, tag = 'smem constant byte address 0x4 - core index']
  #allocation1 [shape = 'u32[144,128]{1,0:T(1,128)}', space=vmem, size = 0x12000, scoped, tag = 'internal scratch']
  #allocation2 [shape = 'f32[10,10,64]{2,1,0:T(8,128)}', space=vmem, size = 0x14000, scoped, tag = 'scratch operand']
  %s0 = inlined_call_operand.vmem [shape: f32[2,64,32], index: 0, kind: input, shape index: {}]
  %s1 = inlined_call_operand.vmem [shape: f32[32,64], index: 1, kind: input, shape index: {}]
  %s2 = inlined_call_operand.vmem [shape: f32[1,64], index: 2, kind: input, shape index: {}]
  %s3 = inlined_call_operand.vmem [shape: f32[9,64], index: 3, kind: input, shape index: {}]
  %s4 = inlined_call_operand.vmem [shape: f32[1,64], index: 4, kind: input, shape index: {}]
  %s5 = inlined_call_operand.vmem [shape: f32[1,64], index: 5, kind: input, shape index: {}]
  %s6 = inlined_call_operand.vmem [shape: f32[1,64], index: 6, kind: input, shape index: {}]
  %s7 = inlined_call_operand.vmem [shape: f32[9,64], index: 7, kind: input, shape index: {}]
  %s8 = inlined_call_operand.vmem [shape: f32[1,64], index: 8, kind: input, shape index: {}]
  %s9 = inlined_call_operand.vmem [shape: f32[1,64], index: 9, kind: input, shape index: {}]
  %s10 = inlined_call_operand.vmem [shape: f32[64,32], index: 10, kind: input, shape index: {}]
  %s11 = inlined_call_operand.vmem [shape: f32[1,32], index: 11, kind: input, shape index: {}]
  %s12 = inlined_call_operand.vmem [shape: f32[2,64,32], index: 12, kind: output, shape index: {}]
  %s13 = sld [smem:[#allocation0]]
  $region81: #{mlp_forward.1} parent=0
    _
  %s15 = ssub.s32 1, %s13
  %s16 = scalar_select 0, %s15, %s13
  loop: start=0, step=1, limit=4
  $region2: #{mlp_forward.1} parent=0 // loop_pre_header
    _
  $region3: #{mlp_forward.1} parent=0 // loop_header
    %s18 = sphi 0, %s22
    %p19 = scmp.ge.s32.totalorder %s18, 4
    %s28 = sphi 0, %s30
    %s31 = sphi 0, %s28
    %s32 = sphi 0, %s31
    %s48 = sphi 0, %s32
    %s52 = sphi 0, %s52
    %s54 = sphi 0, %s52
    %s55 = sphi 0, %s54
    %s69 = sphi 0, %s55
    %s73 = sphi 0, %s73
    %s75 = sphi 0, %s73
    %s76 = sphi 0, %s75
    %s90 = sphi 0, %s76
    %s94 = sphi 0, %s94
    %s96 = sphi 0, %s94
    %s97 = sphi 0, %s96
    %s111 = sphi 0, %s97
    %s115 = sphi 0, %s115
    %s117 = sphi 0, %s115
    %s118 = sphi 0, %s117
    %s132 = sphi 0, %s118
    %s136 = sphi 0, %s136
    %s138 = sphi 0, %s136
    %s139 = sphi 0, %s138
    %s153 = sphi 0, %s139
    %s157 = sphi 0, %s157
    %s159 = sphi 0, %s157
    %s160 = sphi 0, %s159
    %s174 = sphi 0, %s160
    %s178 = sphi 0, %s178
    %s180 = sphi 0, %s178
    %s181 = sphi 0, %s180
    %s195 = sphi 0, %s181
    %s199 = sphi 0, %s199
    %s201 = sphi 0, %s199
    %s202 = sphi 0, %s201
    %s216 = sphi 0, %s202
    %s220 = sphi 0, %s220
    %s222 = sphi 0, %s220
    %s223 = sphi 0, %s222
    %s237 = sphi 0, %s223
    %s241 = sphi 0, %s241
    %s243 = sphi 0, %s241
    %s244 = sphi 0, %s243
    %s258 = sphi 0, %s244
    %s262 = sphi 0, %s262
    %s264 = sphi 0, %s262
    %s265 = sphi 0, %s264
    %s279 = sphi 0, %s265
    %s285 = sphi 0, %s287
    %s288 = sphi 0, %s285
    %s289 = sphi 0, %s288
    %s305 = sphi 0, %s289
  $region4: #{mlp_forward.1} parent=0 // loop_header_branch
    %21 = sbr.rel (%p19) target = $region8
  $region5: #{mlp_forward.1} parent=0 // loop_body
    %s23 = ssub.s32 %s18, 1
    %s24 = ssub.s32 %s18, 2
    %s25 = sadd.s32 %s18, 1
    %s26 = ssub.s32 %s18, %s25
    %p27 = scmp.eq.s32.totalorder %s26, 0
    %s29 = sadd.s32 %s28, 1
    %s30 = scalar_select %p27, %s28, %s29
    %p33 = pneg %p27
    %p34 = scmp.eq.s32.totalorder %s18, 1
    %p35 = por %p33, %p34
    %p36 = scmp.ne.s32.totalorder %s28, %s31
    %p37 = scmp.eq.s32.totalorder %s18, 0
    %p38 = por %p36, %p37
    %p39 = scmp.ne.s32.totalorder %s28, %s31
    %p40 = scmp.eq.s32.totalorder %s23, 1
    %p41 = por %p39, %p40
    %p42 = scmp.ne.s32.totalorder %s31, %s32
    %p43 = scmp.eq.s32.totalorder %s23, 0
    %p44 = por %p42, %p43
    %p45 = scmp.ne.s32.totalorder %s31, %s32
    %p46 = scmp.eq.s32.totalorder %s24, 1
    %p47 = por %p45, %p46
    %p49 = scmp.ne.s32.totalorder %s32, %s48
    %p50 = scmp.eq.s32.totalorder %s24, 0
    %p51 = por %p49, %p50
    %s53 = sadd.s32 %s52, 1
    %p56 = scmp.eq.s32.totalorder %s18, 1
    %p57 = scmp.ne.s32.totalorder %s52, %s54
    %p58 = scmp.eq.s32.totalorder %s18, 0
    %p59 = por %p57, %p58
    %p60 = scmp.ne.s32.totalorder %s52, %s54
    %p61 = scmp.eq.s32.totalorder %s23, 1
    %p62 = por %p60, %p61
    %p63 = scmp.ne.s32.totalorder %s54, %s55
    %p64 = scmp.eq.s32.totalorder %s23, 0
    %p65 = por %p63, %p64
    %p66 = scmp.ne.s32.totalorder %s54, %s55
    %p67 = scmp.eq.s32.totalorder %s24, 1
    %p68 = por %p66, %p67
    %p70 = scmp.ne.s32.totalorder %s55, %s69
    %p71 = scmp.eq.s32.totalorder %s24, 0
    %p72 = por %p70, %p71
    %s74 = sadd.s32 %s73, 1
    %p77 = scmp.eq.s32.totalorder %s18, 1
    %p78 = scmp.ne.s32.totalorder %s73, %s75
    %p79 = scmp.eq.s32.totalorder %s18, 0
    %p80 = por %p78, %p79
    %p81 = scmp.ne.s32.totalorder %s73, %s75
    %p82 = scmp.eq.s32.totalorder %s23, 1
    %p83 = por %p81, %p82
    %p84 = scmp.ne.s32.totalorder %s75, %s76
    %p85 = scmp.eq.s32.totalorder %s23, 0
    %p86 = por %p84, %p85
    %p87 = scmp.ne.s32.totalorder %s75, %s76
    %p88 = scmp.eq.s32.totalorder %s24, 1
    %p89 = por %p87, %p88
    %p91 = scmp.ne.s32.totalorder %s76, %s90
    %p92 = scmp.eq.s32.totalorder %s24, 0
    %p93 = por %p91, %p92
    %s95 = sadd.s32 %s94, 1
    %p98 = scmp.eq.s32.totalorder %s18, 1
    %p99 = scmp.ne.s32.totalorder %s94, %s96
    %p100 = scmp.eq.s32.totalorder %s18, 0
    %p101 = por %p99, %p100
    %p102 = scmp.ne.s32.totalorder %s94, %s96
    %p103 = scmp.eq.s32.totalorder %s23, 1
    %p104 = por %p102, %p103
    %p105 = scmp.ne.s32.totalorder %s96, %s97
    %p106 = scmp.eq.s32.totalorder %s23, 0
    %p107 = por %p105, %p106
    %p108 = scmp.ne.s32.totalorder %s96, %s97
    %p109 = scmp.eq.s32.totalorder %s24, 1
    %p110 = por %p108, %p109
    %p112 = scmp.ne.s32.totalorder %s97, %s111
    %p113 = scmp.eq.s32.totalorder %s24, 0
    %p114 = por %p112, %p113
    %s116 = sadd.s32 %s115, 1
    %p119 = scmp.eq.s32.totalorder %s18, 1
    %p120 = scmp.ne.s32.totalorder %s115, %s117
    %p121 = scmp.eq.s32.totalorder %s18, 0
    %p122 = por %p120, %p121
    %p123 = scmp.ne.s32.totalorder %s115, %s117
    %p124 = scmp.eq.s32.totalorder %s23, 1
    %p125 = por %p123, %p124
    %p126 = scmp.ne.s32.totalorder %s117, %s118
    %p127 = scmp.eq.s32.totalorder %s23, 0
    %p128 = por %p126, %p127
    %p129 = scmp.ne.s32.totalorder %s117, %s118
    %p130 = scmp.eq.s32.totalorder %s24, 1
    %p131 = por %p129, %p130
    %p133 = scmp.ne.s32.totalorder %s118, %s132
    %p134 = scmp.eq.s32.totalorder %s24, 0
    %p135 = por %p133, %p134
    %s137 = sadd.s32 %s136, 1
    %p140 = scmp.eq.s32.totalorder %s18, 1
    %p141 = scmp.ne.s32.totalorder %s136, %s138
    %p142 = scmp.eq.s32.totalorder %s18, 0
    %p143 = por %p141, %p142
    %p144 = scmp.ne.s32.totalorder %s136, %s138
    %p145 = scmp.eq.s32.totalorder %s23, 1
    %p146 = por %p144, %p145
    %p147 = scmp.ne.s32.totalorder %s138, %s139
    %p148 = scmp.eq.s32.totalorder %s23, 0
    %p149 = por %p147, %p148
    %p150 = scmp.ne.s32.totalorder %s138, %s139
    %p151 = scmp.eq.s32.totalorder %s24, 1
    %p152 = por %p150, %p151
    %p154 = scmp.ne.s32.totalorder %s139, %s153
    %p155 = scmp.eq.s32.totalorder %s24, 0
    %p156 = por %p154, %p155
    %s158 = sadd.s32 %s157, 1
    %p161 = scmp.eq.s32.totalorder %s18, 1
    %p162 = scmp.ne.s32.totalorder %s157, %s159
    %p163 = scmp.eq.s32.totalorder %s18, 0
    %p164 = por %p162, %p163
    %p165 = scmp.ne.s32.totalorder %s157, %s159
    %p166 = scmp.eq.s32.totalorder %s23, 1
    %p167 = por %p165, %p166
    %p168 = scmp.ne.s32.totalorder %s159, %s160
    %p169 = scmp.eq.s32.totalorder %s23, 0
    %p170 = por %p168, %p169
    %p171 = scmp.ne.s32.totalorder %s159, %s160
    %p172 = scmp.eq.s32.totalorder %s24, 1
    %p173 = por %p171, %p172
    %p175 = scmp.ne.s32.totalorder %s160, %s174
    %p176 = scmp.eq.s32.totalorder %s24, 0
    %p177 = por %p175, %p176
    %s179 = sadd.s32 %s178, 1
    %p182 = scmp.eq.s32.totalorder %s18, 1
    %p183 = scmp.ne.s32.totalorder %s178, %s180
    %p184 = scmp.eq.s32.totalorder %s18, 0
    %p185 = por %p183, %p184
    %p186 = scmp.ne.s32.totalorder %s178, %s180
    %p187 = scmp.eq.s32.totalorder %s23, 1
    %p188 = por %p186, %p187
    %p189 = scmp.ne.s32.totalorder %s180, %s181
    %p190 = scmp.eq.s32.totalorder %s23, 0
    %p191 = por %p189, %p190
    %p192 = scmp.ne.s32.totalorder %s180, %s181
    %p193 = scmp.eq.s32.totalorder %s24, 1
    %p194 = por %p192, %p193
    %p196 = scmp.ne.s32.totalorder %s181, %s195
    %p197 = scmp.eq.s32.totalorder %s24, 0
    %p198 = por %p196, %p197
    %s200 = sadd.s32 %s199, 1
    %p203 = scmp.eq.s32.totalorder %s18, 1
    %p204 = scmp.ne.s32.totalorder %s199, %s201
    %p205 = scmp.eq.s32.totalorder %s18, 0
    %p206 = por %p204, %p205
    %p207 = scmp.ne.s32.totalorder %s199, %s201
    %p208 = scmp.eq.s32.totalorder %s23, 1
    %p209 = por %p207, %p208
    %p210 = scmp.ne.s32.totalorder %s201, %s202
    %p211 = scmp.eq.s32.totalorder %s23, 0
    %p212 = por %p210, %p211
    %p213 = scmp.ne.s32.totalorder %s201, %s202
    %p214 = scmp.eq.s32.totalorder %s24, 1
    %p215 = por %p213, %p214
    %p217 = scmp.ne.s32.totalorder %s202, %s216
    %p218 = scmp.eq.s32.totalorder %s24, 0
    %p219 = por %p217, %p218
    %s221 = sadd.s32 %s220, 1
    %p224 = scmp.eq.s32.totalorder %s18, 1
    %p225 = scmp.ne.s32.totalorder %s220, %s222
    %p226 = scmp.eq.s32.totalorder %s18, 0
    %p227 = por %p225, %p226
    %p228 = scmp.ne.s32.totalorder %s220, %s222
    %p229 = scmp.eq.s32.totalorder %s23, 1
    %p230 = por %p228, %p229
    %p231 = scmp.ne.s32.totalorder %s222, %s223
    %p232 = scmp.eq.s32.totalorder %s23, 0
    %p233 = por %p231, %p232
    %p234 = scmp.ne.s32.totalorder %s222, %s223
    %p235 = scmp.eq.s32.totalorder %s24, 1
    %p236 = por %p234, %p235
    %p238 = scmp.ne.s32.totalorder %s223, %s237
    %p239 = scmp.eq.s32.totalorder %s24, 0
    %p240 = por %p238, %p239
    %s242 = sadd.s32 %s241, 1
    %p245 = scmp.eq.s32.totalorder %s18, 1
    %p246 = scmp.ne.s32.totalorder %s241, %s243
    %p247 = scmp.eq.s32.totalorder %s18, 0
    %p248 = por %p246, %p247
    %p249 = scmp.ne.s32.totalorder %s241, %s243
    %p250 = scmp.eq.s32.totalorder %s23, 1
    %p251 = por %p249, %p250
    %p252 = scmp.ne.s32.totalorder %s243, %s244
    %p253 = scmp.eq.s32.totalorder %s23, 0
    %p254 = por %p252, %p253
    %p255 = scmp.ne.s32.totalorder %s243, %s244
    %p256 = scmp.eq.s32.totalorder %s24, 1
    %p257 = por %p255, %p256
    %p259 = scmp.ne.s32.totalorder %s244, %s258
    %p260 = scmp.eq.s32.totalorder %s24, 0
    %p261 = por %p259, %p260
    %s263 = sadd.s32 %s262, 1
    %p266 = scmp.eq.s32.totalorder %s18, 1
    %p267 = scmp.ne.s32.totalorder %s262, %s264
    %p268 = scmp.eq.s32.totalorder %s18, 0
    %p269 = por %p267, %p268
    %p270 = scmp.ne.s32.totalorder %s262, %s264
    %p271 = scmp.eq.s32.totalorder %s23, 1
    %p272 = por %p270, %p271
    %p273 = scmp.ne.s32.totalorder %s264, %s265
    %p274 = scmp.eq.s32.totalorder %s23, 0
    %p275 = por %p273, %p274
    %p276 = scmp.ne.s32.totalorder %s264, %s265
    %p277 = scmp.eq.s32.totalorder %s24, 1
    %p278 = por %p276, %p277
    %p280 = scmp.ne.s32.totalorder %s265, %s279
    %p281 = scmp.eq.s32.totalorder %s24, 0
    %p282 = por %p280, %p281
    %s283 = ssub.s32 %s18, %s25
    %p284 = scmp.eq.s32.totalorder %s283, 0
    %s286 = sadd.s32 %s285, 1
    %s287 = scalar_select %p284, %s285, %s286
    %p290 = pneg %p284
    %p291 = scmp.eq.s32.totalorder %s18, 1
    %p292 = por %p290, %p291
    %p293 = scmp.ne.s32.totalorder %s285, %s288
    %p294 = scmp.eq.s32.totalorder %s18, 0
    %p295 = por %p293, %p294
    %p296 = scmp.ne.s32.totalorder %s285, %s288
    %p297 = scmp.eq.s32.totalorder %s23, 1
    %p298 = por %p296, %p297
    %p299 = scmp.ne.s32.totalorder %s288, %s289
    %p300 = scmp.eq.s32.totalorder %s23, 0
    %p301 = por %p299, %p300
    %p302 = scmp.ne.s32.totalorder %s288, %s289
    %p303 = scmp.eq.s32.totalorder %s24, 1
    %p304 = por %p302, %p303
    %p306 = scmp.ne.s32.totalorder %s289, %s305
    %p307 = scmp.eq.s32.totalorder %s24, 0
    %p308 = por %p306, %p307
    %p309 = scmp.le.s32.totalorder 1, %s18
    %p310 = scmp.lt.s32.totalorder %s18, 3
    %p311 = pnand %p309, %p310
    %p312 = pneg %p311
    // Predicated region
    $region9: #{mlp_forward.1} parent=5 // pred_check
      _
    $region10: #{mlp_forward.1} parent=5 // pred_check_branch
      %314 = sbr.rel (%p311) target = $region12
    $region11: #{mlp_forward.1} parent=5 // pred_region
      %s315 = ssub.s32 %s18, 1
      // Predicated region
      $region13: #{mlp_forward.1} parent=11 // pred_check
        %p316 = pneg %p65
      $region14: #{mlp_forward.1} parent=11 // pred_check_branch
        %318 = sbr.rel (%p316) target = $region16
      $region15: #{mlp_forward.1} parent=11 // pred_region
        _
      $region16: #{mlp_forward.1} parent=11 // pred_fallthru
        _
      // Predicated region
      $region17: #{mlp_forward.1} parent=11 // pred_check
        %p319 = pneg %p86
      $region18: #{mlp_forward.1} parent=11 // pred_check_branch
        %321 = sbr.rel (%p319) target = $region20
      $region19: #{mlp_forward.1} parent=11 // pred_region
        _
      $region20: #{mlp_forward.1} parent=11 // pred_fallthru
        _
      // Predicated region
      $region21: #{mlp_forward.1} parent=11 // pred_check
        %p322 = pneg %p107
      $region22: #{mlp_forward.1} parent=11 // pred_check_branch
        %324 = sbr.rel (%p322) target = $region24
      $region23: #{mlp_forward.1} parent=11 // pred_region
        _
      $region24: #{mlp_forward.1} parent=11 // pred_fallthru
        _
      // Predicated region
      $region25: #{mlp_forward.1} parent=11 // pred_check
        %p325 = pneg %p128
      $region26: #{mlp_forward.1} parent=11 // pred_check_branch
        %327 = sbr.rel (%p325) target = $region28
      $region27: #{mlp_forward.1} parent=11 // pred_region
        _
      $region28: #{mlp_forward.1} parent=11 // pred_fallthru
        _
      // Predicated region
      $region29: #{mlp_forward.1} parent=11 // pred_check
        %p328 = pneg %p149
      $region30: #{mlp_forward.1} parent=11 // pred_check_branch
        %330 = sbr.rel (%p328) target = $region32
      $region31: #{mlp_forward.1} parent=11 // pred_region
        _
      $region32: #{mlp_forward.1} parent=11 // pred_fallthru
        _
      // Predicated region
      $region33: #{mlp_forward.1} parent=11 // pred_check
        %p331 = pneg %p170
      $region34: #{mlp_forward.1} parent=11 // pred_check_branch
        %333 = sbr.rel (%p331) target = $region36
      $region35: #{mlp_forward.1} parent=11 // pred_region
        _
      $region36: #{mlp_forward.1} parent=11 // pred_fallthru
        _
      // Predicated region
      $region37: #{mlp_forward.1} parent=11 // pred_check
        %p334 = pneg %p191
      $region38: #{mlp_forward.1} parent=11 // pred_check_branch
        %336 = sbr.rel (%p334) target = $region40
      $region39: #{mlp_forward.1} parent=11 // pred_region
        _
      $region40: #{mlp_forward.1} parent=11 // pred_fallthru
        _
      // Predicated region
      $region41: #{mlp_forward.1} parent=11 // pred_check
        %p337 = pneg %p212
      $region42: #{mlp_forward.1} parent=11 // pred_check_branch
        %339 = sbr.rel (%p337) target = $region44
      $region43: #{mlp_forward.1} parent=11 // pred_region
        _
      $region44: #{mlp_forward.1} parent=11 // pred_fallthru
        _
      // Predicated region
      $region45: #{mlp_forward.1} parent=11 // pred_check
        %p340 = pneg %p233
      $region46: #{mlp_forward.1} parent=11 // pred_check_branch
        %342 = sbr.rel (%p340) target = $region48
      $region47: #{mlp_forward.1} parent=11 // pred_region
        _
      $region48: #{mlp_forward.1} parent=11 // pred_fallthru
        _
      // Predicated region
      $region49: #{mlp_forward.1} parent=11 // pred_check
        %p343 = pneg %p254
      $region50: #{mlp_forward.1} parent=11 // pred_check_branch
        %345 = sbr.rel (%p343) target = $region52
      $region51: #{mlp_forward.1} parent=11 // pred_region
        _
      $region52: #{mlp_forward.1} parent=11 // pred_fallthru
        _
      // Predicated region
      $region53: #{mlp_forward.1} parent=11 // pred_check
        %p346 = pneg %p275
      $region54: #{mlp_forward.1} parent=11 // pred_check_branch
        %348 = sbr.rel (%p346) target = $region56
      $region55: #{mlp_forward.1} parent=11 // pred_region
        _
      $region56: #{mlp_forward.1} parent=11 // pred_fallthru
        _
    $region12: #{mlp_forward.1} parent=5 // pred_fallthru
      _
    %p349 = scmp.lt.s32.totalorder %s18, 2
    // Predicated region
    $region57: #{mlp_forward.1} parent=5 // pred_check
      %p350 = pneg %p349
    $region58: #{mlp_forward.1} parent=5 // pred_check_branch
      %352 = sbr.rel (%p350) target = $region60
    $region59: #{mlp_forward.1} parent=5 // pred_region
      // Predicated region
      $region61: #{mlp_forward.1} parent=59 // pred_check
        %p353 = pneg %p38
      $region62: #{mlp_forward.1} parent=59 // pred_check_branch
        %355 = sbr.rel (%p353) target = $region64
      $region63: #{mlp_forward.1} parent=59 // pred_region
        %p356 = scmp.lt.s32.totalorder %s18, 1
        %s357 = scalar_select %p356, %s18, 1
        %s358 = smul.addr %s357, 8
        %s359 = smul.addr %s358, 8
        %s360 = scalar_lea.vmem %s0, %s359
      $region64: #{mlp_forward.1} parent=59 // pred_fallthru
        _
    $region60: #{mlp_forward.1} parent=5 // pred_fallthru
      _
    %p361 = scmp.le.s32.totalorder 1, %s18
    %p362 = scmp.lt.s32.totalorder %s18, 3
    %p363 = pnand %p361, %p362
    %p364 = pneg %p363
    // Predicated region
    $region65: #{mlp_forward.1} parent=5 // pred_check
      _
    $region66: #{mlp_forward.1} parent=5 // pred_check_branch
      %366 = sbr.rel (%p363) target = $region68
    $region67: #{mlp_forward.1} parent=5 // pred_region
      %s367 = ssub.s32 %s18, 1
      %p368 = scmp.lt.s32.totalorder %s23, 1
      %s369 = scalar_select %p368, %s23, 1
      %s370 = smul.addr %s369, 8
      %s371 = smul.addr %s370, 8
      %s372 = scalar_lea.vmem %s0, %s371
      %p373 = pneg %p44
      %p374 = pneg %p41
      %p375 = pneg %p65
      %p376 = pneg %p62
      %p377 = pneg %p86
      %p378 = pneg %p83
      %p379 = pneg %p107
      %p380 = pneg %p104
      %p381 = pneg %p128
      %p382 = pneg %p125
      %p383 = pneg %p149
      %p384 = pneg %p146
      %p385 = pneg %p170
      %p386 = pneg %p167
      %p387 = pneg %p191
      %p388 = pneg %p188
      %p389 = pneg %p212
      %p390 = pneg %p209
      %p391 = pneg %p233
      %p392 = pneg %p230
      %p393 = pneg %p254
      %p394 = pneg %p251
      %p395 = pneg %p275
      %p396 = pneg %p272
      %p397 = pneg %p301
      %p398 = pneg %p298
      %p399 = scmp.lt.s32.totalorder %s23, 1
      %s400 = scalar_select %p399, %s23, 1
      %s401 = smul.addr %s400, 8
      %s402 = smul.addr %s401, 8
      %s403 = scalar_lea.vmem %s12, %s402
      %p404 = scmp.lt.s32.totalorder %s23, 1
      %s405 = scalar_select %p404, %s23, 1
      %s406 = smul.addr %s405, 8
      %s407 = smul.addr %s406, 8
      %s408 = scalar_lea.vmem %s0, %s407
      %p409 = scmp.lt.s32.totalorder %s23, 1
      %s410 = scalar_select %p409, %s23, 1
      %s411 = smul.addr %s410, 8
      %s412 = smul.addr %s411, 8
      %s413 = scalar_lea.vmem %s12, %s412
      %v414 = vld [vmem:[%s408] sm:$0xff]
      %v415 = vld [vmem:[%s408 + $0x8] sm:$0xff]
      %v416 = vld [vmem:[%s408 + $0x10] sm:$0xff]
      %v417 = vld [vmem:[%s408 + $0x18] sm:$0xff]
      %v418 = vld [vmem:[%s408 + $0x20] sm:$0xff]
      %v419 = vld [vmem:[%s408 + $0x28] sm:$0xff]
      %v420 = vld [vmem:[%s408 + $0x30] sm:$0xff]
      %v421 = vld [vmem:[%s408 + $0x38] sm:$0xff]
      %v422 = vld [vmem:[%s1] sm:$0xff]
      %v423 = vld [vmem:[%s1 + $0x8] sm:$0xff]
      %v424 = vld [vmem:[%s1 + $0x10] sm:$0xff]
      %v425 = vld [vmem:[%s1 + $0x18] sm:$0xff]
      %v426 = vld [vmem:[%s2] sm:$0x1]
      %v428 = vlaneseq
      %v429 = vshrl.u32 %v428, 7
      %v430 = vsub.s32 0, %v429
      %v431 = vrot.slane %v426, %v430
      %vm433 = vcmask 261120
      %v435 = vsel %vm433, %v414, 0
      %v438 = vsel %vm433, %v415, 0
      %v441 = vsel %vm433, %v416, 0
      %v444 = vsel %vm433, %v417, 0
      %v447 = vsel %vm433, %v418, 0
      %v450 = vsel %vm433, %v419, 0
      %v453 = vsel %vm433, %v420, 0
      %v456 = vsel %vm433, %v421, 0
      %458 = vmatprep.subr.mxu0 0.0
      %459 = vmatpush1.msra.mxu0 %v422
      %460 = vmatprep.subr.mxu0 0.0
      %461 = vmatpush1.msra.mxu0 %v423
      %462 = vmatprep.subr.mxu0 0.0
      %463 = vmatpush1.msra.mxu0 %v424
      %464 = vmatprep.subr.mxu0 0.0
      %465 = vmatpush1.msra.mxu0 %v425
      %466 = vmatprep.subr.mxu0 0.0
      %467 = vmatpush1.msra.mxu0 0.0
      %468 = vmatprep.subr.mxu0 0.0
      %469 = vmatpush1.msra.mxu0 0.0
      %470 = vmatprep.subr.mxu0 0.0
      %471 = vmatpush1.msra.mxu0 0.0
      %472 = vmatprep.subr.mxu0 0.0
      %473 = vmatpush1.msra.mxu0 0.0
      %474 = vmatprep.subr.mxu0 0.0
      %475 = vmatpush1.msra.mxu0 0.0
      %476 = vmatprep.subr.mxu0 0.0
      %477 = vmatpush1.msra.mxu0 0.0
      %478 = vmatprep.subr.mxu0 0.0
      %479 = vmatpush1.msra.mxu0 0.0
      %480 = vmatprep.subr.mxu0 0.0
      %481 = vmatpush1.msra.mxu0 0.0
      %482 = vmatprep.subr.mxu0 0.0
      %483 = vmatpush1.msra.mxu0 0.0
      %484 = vmatprep.subr.mxu0 0.0
      %485 = vmatpush1.msra.mxu0 0.0
      %486 = vmatprep.subr.mxu0 0.0
      %487 = vmatpush1.msra.mxu0 0.0
      %488 = vmatprep.subr.mxu0 0.0
      %489 = vmatpush1.msra.mxu0 0.0
      %490 = vmatprep.subr.mxu0 0.0
      %491 = vmatpush1.msra.mxu0 0.0
      %492 = vmatprep.subr.mxu0 0.0
      %493 = vmatpush1.msra.mxu0 0.0
      %494 = vmatprep.subr.mxu0 0.0
      %495 = vmatpush1.msra.mxu0 0.0
      %496 = vmatprep.subr.mxu0 0.0
      %497 = vmatpush1.msra.mxu0 0.0
      %498 = vmatprep.subr.mxu0 0.0
      %499 = vmatpush1.msra.mxu0 0.0
      %500 = vmatprep.subr.mxu0 0.0
      %501 = vmatpush1.msra.mxu0 0.0
      %502 = vmatprep.subr.mxu0 0.0
      %503 = vmatpush1.msra.mxu0 0.0
      %504 = vmatprep.subr.mxu0 0.0
      %505 = vmatpush1.msra.mxu0 0.0
      %506 = vmatprep.subr.mxu0 0.0
      %507 = vmatpush1.msra.mxu0 0.0
      %508 = vmatprep.subr.mxu0 0.0
      %509 = vmatpush1.msra.mxu0 0.0
      %510 = vmatprep.subr.mxu0 0.0
      %511 = vmatpush1.msra.mxu0 0.0
      %512 = vmatprep.subr.mxu0 0.0
      %513 = vmatpush1.msra.mxu0 0.0
      %514 = vmatprep.subr.mxu0 0.0
      %515 = vmatpush1.msra.mxu0 0.0
      %516 = vmatprep.subr.mxu0 0.0
      %517 = vmatpush1.msra.mxu0 0.0
      %518 = vmatprep.subr.mxu0 0.0
      %519 = vmatpush1.msra.mxu0 0.0
      %520 = vmatprep.subr.mxu0 0.0
      %521 = vmatpush1.msra.mxu0 0.0
      %522 = vmatprep.mubr.f32.mxu0 0.0
      %523 = vmatmul.mubr.f32.gmra.mrb[0].mxu0 %v435
      %v524 = vpop.f32.mrb[0].mxu0
      %v525 = vadd.f32 %v431, %v524
      %v526 = vpop.f32.mrb[0].mxu0
      %527 = vmatprep.mubr.f32.mxu0 0.0
      %528 = vmatmul.mubr.f32.gmra.mrb[0].mxu0 %v438
      %v529 = vpop.f32.mrb[0].mxu0
      %v530 = vadd.f32 %v431, %v529
      %v531 = vpop.f32.mrb[0].mxu0
      %532 = vmatprep.mubr.f32.mxu0 0.0
      %533 = vmatmul.mubr.f32.gmra.mrb[0].mxu0 %v441
      %v534 = vpop.f32.mrb[0].mxu0
      %v535 = vadd.f32 %v431, %v534
      %v536 = vpop.f32.mrb[0].mxu0
      %537 = vmatprep.mubr.f32.mxu0 0.0
      %538 = vmatmul.mubr.f32.gmra.mrb[0].mxu0 %v444
      %v539 = vpop.f32.mrb[0].mxu0
      %v540 = vadd.f32 %v431, %v539
      %v541 = vpop.f32.mrb[0].mxu0
      %542 = vmatprep.mubr.f32.mxu0 0.0
      %543 = vmatmul.mubr.f32.gmra.mrb[0].mxu0 %v447
      %v544 = vpop.f32.mrb[0].mxu0
      %v545 = vadd.f32 %v431, %v544
      %v546 = vpop.f32.mrb[0].mxu0
      %547 = vmatprep.mubr.f32.mxu0 0.0
      %548 = vmatmul.mubr.f32.gmra.mrb[0].mxu0 %v450
      %v549 = vpop.f32.mrb[0].mxu0
      %v550 = vadd.f32 %v431, %v549
      %v551 = vpop.f32.mrb[0].mxu0
      %552 = vmatprep.mubr.f32.mxu0 0.0
      %553 = vmatmul.mubr.f32.gmra.mrb[0].mxu0 %v453
      %v554 = vpop.f32.mrb[0].mxu0
      %v555 = vadd.f32 %v431, %v554
      %v556 = vpop.f32.mrb[0].mxu0
      %557 = vmatprep.mubr.f32.mxu0 0.0
      %558 = vmatmul.mubr.f32.gmra.mrb[0].mxu0 %v456
      %v559 = vpop.f32.mrb[0].mxu0
      %v560 = vadd.f32 %v431, %v559
      %v561 = vpop.f32.mrb[0].mxu0
      %562 = vdwg.mxu0
      %vm563 = vcmask 523264
      %564 = vst.msk [vmem:[#allocation2] sm:$0xff] %vm563, 0.0
      %vm565 = vcmask 517120
      %566 = vst.msk [vmem:[#allocation2 + $0x8] sm:$0x3] %vm565, 0.0
      %567 = vst.msk [vmem:[#allocation2 + $0x10] sm:$0xff] %vm563, 0.0
      %568 = vst.msk [vmem:[#allocation2 + $0x18] sm:$0x3] %vm565, 0.0
      %569 = vst.msk [vmem:[#allocation2 + $0x20] sm:$0xff] %vm563, 0.0
      %570 = vst.msk [vmem:[#allocation2 + $0x28] sm:$0x3] %vm565, 0.0
      %571 = vst.msk [vmem:[#allocation2 + $0x30] sm:$0xff] %vm563, 0.0
      %572 = vst.msk [vmem:[#allocation2 + $0x38] sm:$0x3] %vm565, 0.0
      %573 = vst.msk [vmem:[#allocation2 + $0x40] sm:$0xff] %vm563, 0.0
      %574 = vst.msk [vmem:[#allocation2 + $0x48] sm:$0x3] %vm565, 0.0
      %575 = vst.msk [vmem:[#allocation2 + $0x50] sm:$0xff] %vm563, 0.0
      %576 = vst.msk [vmem:[#allocation2 + $0x58] sm:$0x3] %vm565, 0.0
      %577 = vst.msk [vmem:[#allocation2 + $0x60] sm:$0xff] %vm563, 0.0
      %578 = vst.msk [vmem:[#allocation2 + $0x68] sm:$0x3] %vm565, 0.0
      %579 = vst.msk [vmem:[#allocation2 + $0x70] sm:$0xff] %vm563, 0.0
      %580 = vst.msk [vmem:[#allocation2 + $0x78] sm:$0x3] %vm565, 0.0
      %581 = vst.msk [vmem:[#allocation2 + $0x80] sm:$0xff] %vm563, 0.0
      %582 = vst.msk [vmem:[#allocation2 + $0x88] sm:$0x3] %vm565, 0.0
      %583 = vst.msk [vmem:[#allocation2 + $0x90] sm:$0xff] %vm563, 0.0
      %584 = vst.msk [vmem:[#allocation2 + $0x98] sm:$0x3] %vm565, 0.0
      %s585 = scalar_lea.vmem [#allocation2], 16
      %586 = vst.msk [vmem:[%s585 + $0x1] sm:$0xff] %vm563, %v525
      %587 = vst.msk [vmem:[%s585 + $0x11] sm:$0xff] %vm563, %v530
      %588 = vst.msk [vmem:[%s585 + $0x21] sm:$0xff] %vm563, %v535
      %589 = vst.msk [vmem:[%s585 + $0x31] sm:$0xff] %vm563, %v540
      %590 = vst.msk [vmem:[%s585 + $0x41] sm:$0xff] %vm563, %v545
      %591 = vst.msk [vmem:[%s585 + $0x51] sm:$0xff] %vm563, %v550
      %592 = vst.msk [vmem:[%s585 + $0x61] sm:$0xff] %vm563, %v555
      %593 = vst.msk [vmem:[%s585 + $0x71] sm:$0xff] %vm563, %v560
      %v594 = vld [vmem:[#allocation2] sm:$0xff]
      %v595 = vld [vmem:[#allocation2 + $0x10] sm:$0xff]
      %v596 = vld [vmem:[#allocation2 + $0x20] sm:$0xff]
      %v597 = vld [vmem:[#allocation2 + $0x30] sm:$0xff]
      %v598 = vld [vmem:[#allocation2 + $0x40] sm:$0xff]
      %v599 = vld [vmem:[#allocation2 + $0x50] sm:$0xff]
      %v600 = vld [vmem:[#allocation2 + $0x60] sm:$0xff]
      %v601 = vld [vmem:[#allocation2 + $0x70] sm:$0xff]
      %v602 = vld [vmem:[%s3] sm:$0x1]
      %v603 = vlaneseq
      %v604 = vshrl.u32 %v603, 7
      %v605 = vsub.s32 0, %v604
      %v606 = vrot.slane %v602, %v605
      %v607 = vmul.f32 %v594, %v606
      %v608 = vmul.f32 %v595, %v606
      %v609 = vmul.f32 %v596, %v606
      %v610 = vmul.f32 %v597, %v606
      %v611 = vmul.f32 %v598, %v606
      %v612 = vmul.f32 %v599, %v606
      %v613 = vmul.f32 %v600, %v606
      %v614 = vmul.f32 %v601, %v606
      %v615 = vld [vmem:[#allocation2 + $0x1] sm:$0xff]
      %v616 = vld [vmem:[#allocation2 + $0x11] sm:$0xff]
      %v617 = vld [vmem:[#allocation2 + $0x21] sm:$0xff]
      %v618 = vld [vmem:[#allocation2 + $0x31] sm:$0xff]
      %v619 = vld [vmem:[#allocation2 + $0x41] sm:$0xff]
      %v620 = vld [vmem:[#allocation2 + $0x51] sm:$0xff]
      %v621 = vld [vmem:[#allocation2 + $0x61] sm:$0xff]
      %v622 = vld [vmem:[#allocation2 + $0x71] sm:$0xff]
      %v623 = vld [vmem:[%s3 + $0x1] sm:$0x1]
      %v624 = vlaneseq
      %v625 = vshrl.u32 %v624, 7
      %v626 = vsub.s32 0, %v625
      %v627 = vrot.slane %v623, %v626
      %v628 = vmul.f32 %v615, %v627
      %v629 = vmul.f32 %v616, %v627
      %v630 = vmul.f32 %v617, %v627
      %v631 = vmul.f32 %v618, %v627
      %v632 = vmul.f32 %v619, %v627
      %v633 = vmul.f32 %v620, %v627
      %v634 = vmul.f32 %v621, %v627
      %v635 = vmul.f32 %v622, %v627
      %v636 = vadd.f32 %v607, %v628
      %v637 = vadd.f32 %v608, %v629
      %v638 = vadd.f32 %v609, %v630
      %v639 = vadd.f32 %v610, %v631
      %v640 = vadd.f32 %v611, %v632
      %v641 = vadd.f32 %v612, %v633
      %v642 = vadd.f32 %v613, %v634
      %v643 = vadd.f32 %v614, %v635
      %v644 = vld [vmem:[#allocation2 + $0x2] sm:$0xff]
      %v645 = vld [vmem:[#allocation2 + $0x12] sm:$0xff]
      %v646 = vld [vmem:[#allocation2 + $0x22] sm:$0xff]
      %v647 = vld [vmem:[#allocation2 + $0x32] sm:$0xff]
      %v648 = vld [vmem:[#allocation2 + $0x42] sm:$0xff]
      %v649 = vld [vmem:[#allocation2 + $0x52] sm:$0xff]
      %v650 = vld [vmem:[#allocation2 + $0x62] sm:$0xff]
      %v651 = vld [vmem:[#allocation2 + $0x72] sm:$0xff]
      %v652 = vld [vmem:[%s3 + $0x2] sm:$0x1]
      %v653 = vlaneseq
      %v654 = vshrl.u32 %v653, 7
      %v655 = vsub.s32 0, %v654
      %v656 = vrot.slane %v652, %v655
      %v657 = vmul.f32 %v644, %v656
      %v658 = vmul.f32 %v645, %v656
      %v659 = vmul.f32 %v646, %v656
      %v660 = vmul.f32 %v647, %v656
      %v661 = vmul.f32 %v648, %v656
      %v662 = vmul.f32 %v649, %v656
      %v663 = vmul.f32 %v650, %v656
      %v664 = vmul.f32 %v651, %v656
      %v665 = vadd.f32 %v636, %v657
      %v666 = vadd.f32 %v637, %v658
      %v667 = vadd.f32 %v638, %v659
      %v668 = vadd.f32 %v639, %v660
      %v669 = vadd.f32 %v640, %v661
      %v670 = vadd.f32 %v641, %v662
      %v671 = vadd.f32 %v642, %v663
      %v672 = vadd.f32 %v643, %v664
      %v673 = vld [vmem:[%s585] sm:$0xff]
      %v674 = vld [vmem:[%s585 + $0x10] sm:$0xff]
      %v675 = vld [vmem:[%s585 + $0x20] sm:$0xff]
      %v676 = vld [vmem:[%s585 + $0x30] sm:$0xff]
      %v677 = vld [vmem:[%s585 + $0x40] sm:$0xff]
      %v678 = vld [vmem:[%s585 + $0x50] sm:$0xff]
      %v679 = vld [vmem:[%s585 + $0x60] sm:$0xff]
      %v680 = vld [vmem:[%s585 + $0x70] sm:$0xff]
      %v681 = vld [vmem:[%s3 + $0x3] sm:$0x1]
      %v682 = vlaneseq
      %v683 = vshrl.u32 %v682, 7
      %v684 = vsub.s32 0, %v683
      %v685 = vrot.slane %v681, %v684
      %v686 = vmul.f32 %v673, %v685
      %v687 = vmul.f32 %v674, %v685
      %v688 = vmul.f32 %v675, %v685
      %v689 = vmul.f32 %v676, %v685
      %v690 = vmul.f32 %v677, %v685
      %v691 = vmul.f32 %v678, %v685
      %v692 = vmul.f32 %v679, %v685
      %v693 = vmul.f32 %v680, %v685
      %v694 = vadd.f32 %v665, %v686
      %v695 = vadd.f32 %v666, %v687
      %v696 = vadd.f32 %v667, %v688
      %v697 = vadd.f32 %v668, %v689
      %v698 = vadd.f32 %v669, %v690
      %v699 = vadd.f32 %v670, %v691
      %v700 = vadd.f32 %v671, %v692
      %v701 = vadd.f32 %v672, %v693
      %v702 = vld [vmem:[%s585 + $0x1] sm:$0xff]
      %v703 = vld [vmem:[%s585 + $0x11] sm:$0xff]
      %v704 = vld [vmem:[%s585 + $0x21] sm:$0xff]
      %v705 = vld [vmem:[%s585 + $0x31] sm:$0xff]
      %v706 = vld [vmem:[%s585 + $0x41] sm:$0xff]
      %v707 = vld [vmem:[%s585 + $0x51] sm:$0xff]
      %v708 = vld [vmem:[%s585 + $0x61] sm:$0xff]
      %v709 = vld [vmem:[%s585 + $0x71] sm:$0xff]
      %v710 = vld [vmem:[%s3 + $0x4] sm:$0x1]
      %v711 = vlaneseq
      %v712 = vshrl.u32 %v711, 7
      %v713 = vsub.s32 0, %v712
      %v714 = vrot.slane %v710, %v713
      %v715 = vmul.f32 %v702, %v714
      %v716 = vmul.f32 %v703, %v714
      %v717 = vmul.f32 %v704, %v714
      %v718 = vmul.f32 %v705, %v714
      %v719 = vmul.f32 %v706, %v714
      %v720 = vmul.f32 %v707, %v714
      %v721 = vmul.f32 %v708, %v714
      %v722 = vmul.f32 %v709, %v714
      %v723 = vadd.f32 %v694, %v715
      %v724 = vadd.f32 %v695, %v716
      %v725 = vadd.f32 %v696, %v717
      %v726 = vadd.f32 %v697, %v718
      %v727 = vadd.f32 %v698, %v719
      %v728 = vadd.f32 %v699, %v720
      %v729 = vadd.f32 %v700, %v721
      %v730 = vadd.f32 %v701, %v722
      %v731 = vld [vmem:[%s585 + $0x2] sm:$0xff]
      %v732 = vld [vmem:[%s585 + $0x12] sm:$0xff]
      %v733 = vld [vmem:[%s585 + $0x22] sm:$0xff]
      %v734 = vld [vmem:[%s585 + $0x32] sm:$0xff]
      %v735 = vld [vmem:[%s585 + $0x42] sm:$0xff]
      %v736 = vld [vmem:[%s585 + $0x52] sm:$0xff]
      %v737 = vld [vmem:[%s585 + $0x62] sm:$0xff]
      %v738 = vld [vmem:[%s585 + $0x72] sm:$0xff]
      %v739 = vld [vmem:[%s3 + $0x5] sm:$0x1]
      %v740 = vlaneseq
      %v741 = vshrl.u32 %v740, 7
      %v742 = vsub.s32 0, %v741
      %v743 = vrot.slane %v739, %v742
      %v744 = vmul.f32 %v731, %v743
      %v745 = vmul.f32 %v732, %v743
      %v746 = vmul.f32 %v733, %v743
      %v747 = vmul.f32 %v734, %v743
      %v748 = vmul.f32 %v735, %v743
      %v749 = vmul.f32 %v736, %v743
      %v750 = vmul.f32 %v737, %v743
      %v751 = vmul.f32 %v738, %v743
      %v752 = vadd.f32 %v723, %v744
      %v753 = vadd.f32 %v724, %v745
      %v754 = vadd.f32 %v725, %v746
      %v755 = vadd.f32 %v726, %v747
      %v756 = vadd.f32 %v727, %v748
      %v757 = vadd.f32 %v728, %v749
      %v758 = vadd.f32 %v729, %v750
      %v759 = vadd.f32 %v730, %v751
      %s760 = scalar_lea.vmem [#allocation2], 32
      %v761 = vld [vmem:[%s760] sm:$0xff]
      %v762 = vld [vmem:[%s760 + $0x10] sm:$0xff]
      %v763 = vld [vmem:[%s760 + $0x20] sm:$0xff]
      %v764 = vld [vmem:[%s760 + $0x30] sm:$0xff]
      %v765 = vld [vmem:[%s760 + $0x40] sm:$0xff]
      %v766 = vld [vmem:[%s760 + $0x50] sm:$0xff]
      %v767 = vld [vmem:[%s760 + $0x60] sm:$0xff]
      %v768 = vld [vmem:[%s760 + $0x70] sm:$0xff]
      %v769 = vld [vmem:[%s3 + $0x6] sm:$0x1]
      %v770 = vlaneseq
      %v771 = vshrl.u32 %v770, 7
      %v772 = vsub.s32 0, %v771
      %v773 = vrot.slane %v769, %v772
      %v774 = vmul.f32 %v761, %v773
      %v775 = vmul.f32 %v762, %v773
      %v776 = vmul.f32 %v763, %v773
      %v777 = vmul.f32 %v764, %v773
      %v778 = vmul.f32 %v765, %v773
      %v779 = vmul.f32 %v766, %v773
      %v780 = vmul.f32 %v767, %v773
      %v781 = vmul.f32 %v768, %v773
      %v782 = vadd.f32 %v752, %v774
      %v783 = vadd.f32 %v753, %v775
      %v784 = vadd.f32 %v754, %v776
      %v785 = vadd.f32 %v755, %v777
      %v786 = vadd.f32 %v756, %v778
      %v787 = vadd.f32 %v757, %v779
      %v788 = vadd.f32 %v758, %v780
      %v789 = vadd.f32 %v759, %v781
      %v790 = vld [vmem:[%s760 + $0x1] sm:$0xff]
      %v791 = vld [vmem:[%s760 + $0x11] sm:$0xff]
      %v792 = vld [vmem:[%s760 + $0x21] sm:$0xff]
      %v793 = vld [vmem:[%s760 + $0x31] sm:$0xff]
      %v794 = vld [vmem:[%s760 + $0x41] sm:$0xff]
      %v795 = vld [vmem:[%s760 + $0x51] sm:$0xff]
      %v796 = vld [vmem:[%s760 + $0x61] sm:$0xff]
      %v797 = vld [vmem:[%s760 + $0x71] sm:$0xff]
      %v798 = vld [vmem:[%s3 + $0x7] sm:$0x1]
      %v799 = vlaneseq
      %v800 = vshrl.u32 %v799, 7
      %v801 = vsub.s32 0, %v800
      %v802 = vrot.slane %v798, %v801
      %v803 = vmul.f32 %v790, %v802
      %v804 = vmul.f32 %v791, %v802
      %v805 = vmul.f32 %v792, %v802
      %v806 = vmul.f32 %v793, %v802
      %v807 = vmul.f32 %v794, %v802
      %v808 = vmul.f32 %v795, %v802
      %v809 = vmul.f32 %v796, %v802
      %v810 = vmul.f32 %v797, %v802
      %v811 = vadd.f32 %v782, %v803
      %v812 = vadd.f32 %v783, %v804
      %v813 = vadd.f32 %v784, %v805
      %v814 = vadd.f32 %v785, %v806
      %v815 = vadd.f32 %v786, %v807
      %v816 = vadd.f32 %v787, %v808
      %v817 = vadd.f32 %v788, %v809
      %v818 = vadd.f32 %v789, %v810
      %v819 = vld [vmem:[%s760 + $0x2] sm:$0xff]
      %v820 = vld [vmem:[%s760 + $0x12] sm:$0xff]
      %v821 = vld [vmem:[%s760 + $0x22] sm:$0xff]
      %v822 = vld [vmem:[%s760 + $0x32] sm:$0xff]
      %v823 = vld [vmem:[%s760 + $0x42] sm:$0xff]
      %v824 = vld [vmem:[%s760 + $0x52] sm:$0xff]
      %v825 = vld [vmem:[%s760 + $0x62] sm:$0xff]
      %v826 = vld [vmem:[%s760 + $0x72] sm:$0xff]
      %v827 = vld [vmem:[%s3 + $0x8] sm:$0x1]
      %v828 = vlaneseq
      %v829 = vshrl.u32 %v828, 7
      %v830 = vsub.s32 0, %v829
      %v831 = vrot.slane %v827, %v830
      %v832 = vmul.f32 %v819, %v831
      %v833 = vmul.f32 %v820, %v831
      %v834 = vmul.f32 %v821, %v831
      %v835 = vmul.f32 %v822, %v831
      %v836 = vmul.f32 %v823, %v831
      %v837 = vmul.f32 %v824, %v831
      %v838 = vmul.f32 %v825, %v831
      %v839 = vmul.f32 %v826, %v831
      %v840 = vadd.f32 %v811, %v832
      %v841 = vadd.f32 %v812, %v833
      %v842 = vadd.f32 %v813, %v834
      %v843 = vadd.f32 %v814, %v835
      %v844 = vadd.f32 %v815, %v836
      %v845 = vadd.f32 %v816, %v837
      %v846 = vadd.f32 %v817, %v838
      %v847 = vadd.f32 %v818, %v839
      %v848 = vld [vmem:[%s4] sm:$0x1]
      %v850 = vlaneseq
      %v851 = vshrl.u32 %v850, 7
      %v852 = vsub.s32 0, %v851
      %v853 = vrot.slane %v848, %v852
      %v855 = vadd.f32 %v840, %v853
      %v856 = vadd.f32 %v841, %v853
      %v857 = vadd.f32 %v842, %v853
      %v858 = vadd.f32 %v843, %v853
      %v859 = vadd.f32 %v844, %v853
      %v860 = vadd.f32 %v845, %v853
      %v861 = vadd.f32 %v846, %v853
      %v862 = vadd.f32 %v847, %v853
      %v863 = vmul.f32 %v855, 0.5
      %v864 = vmul.f32 %v856, 0.5
      %v865 = vmul.f32 %v857, 0.5
      %v866 = vmul.f32 %v858, 0.5
      %v867 = vmul.f32 %v859, 0.5
      %v868 = vmul.f32 %v860, 0.5
      %v869 = vmul.f32 %v861, 0.5
      %v870 = vmul.f32 %v862, 0.5
      %v871 = vmul.f32 %v855, 0.70710677
      %v872 = vmul.f32 %v856, 0.70710677
      %v873 = vmul.f32 %v857, 0.70710677
      %v874 = vmul.f32 %v858, 0.70710677
      %v875 = vmul.f32 %v859, 0.70710677
      %v876 = vmul.f32 %v860, 0.70710677
      %v877 = vmul.f32 %v861, 0.70710677
      %v878 = vmul.f32 %v862, 0.70710677
      %v879 = vand.u32 2147483647, %v871
      %v880 = vand.u32 2147483647, %v872
      %v881 = vand.u32 2147483647, %v873
      %v882 = vand.u32 2147483647, %v874
      %v883 = vand.u32 2147483647, %v875
      %v884 = vand.u32 2147483647, %v876
      %v885 = vand.u32 2147483647, %v877
      %v886 = vand.u32 2147483647, %v878
      %v887 = vmul.f32 %v879, 0.3275911
      %v888 = vmul.f32 %v880, 0.3275911
      %v889 = vmul.f32 %v881, 0.3275911
      %v890 = vmul.f32 %v882, 0.3275911
      %v891 = vmul.f32 %v883, 0.3275911
      %v892 = vmul.f32 %v884, 0.3275911
      %v893 = vmul.f32 %v885, 0.3275911
      %v894 = vmul.f32 %v886, 0.3275911
      %v895 = vadd.f32 %v887, 1.0
      %v896 = vadd.f32 %v888, 1.0
      %v897 = vadd.f32 %v889, 1.0
      %v898 = vadd.f32 %v890, 1.0
      %v899 = vadd.f32 %v891, 1.0
      %v900 = vadd.f32 %v892, 1.0
      %v901 = vadd.f32 %v893, 1.0
      %v902 = vadd.f32 %v894, 1.0
      %v903 = vrcp.pop %v895
      %v904 = vmul.f32 1.0, %v903
      %v905 = vrcp.pop %v896
      %v906 = vmul.f32 1.0, %v905
      %v907 = vrcp.pop %v897
      %v908 = vmul.f32 1.0, %v907
      %v909 = vrcp.pop %v898
      %v910 = vmul.f32 1.0, %v909
      %v911 = vrcp.pop %v899
      %v912 = vmul.f32 1.0, %v911
      %v913 = vrcp.pop %v900
      %v914 = vmul.f32 1.0, %v913
      %v915 = vrcp.pop %v901
      %v916 = vmul.f32 1.0, %v915
      %v917 = vrcp.pop %v902
      %v918 = vmul.f32 1.0, %v917
      %v919 = vmul.f32 %v904, 1.0614054
      %v920 = vmul.f32 %v906, 1.0614054
      %v921 = vmul.f32 %v908, 1.0614054
      %v922 = vmul.f32 %v910, 1.0614054
      %v923 = vmul.f32 %v912, 1.0614054
      %v924 = vmul.f32 %v914, 1.0614054
      %v925 = vmul.f32 %v916, 1.0614054
      %v926 = vmul.f32 %v918, 1.0614054
      %v927 = vadd.f32 %v919, -1.4531521
      %v928 = vadd.f32 %v920, -1.4531521
      %v929 = vadd.f32 %v921, -1.4531521
      %v930 = vadd.f32 %v922, -1.4531521
      %v931 = vadd.f32 %v923, -1.4531521
      %v932 = vadd.f32 %v924, -1.4531521
      %v933 = vadd.f32 %v925, -1.4531521
      %v934 = vadd.f32 %v926, -1.4531521
      %v935 = vmul.f32 %v927, %v904
      %v936 = vmul.f32 %v928, %v906
      %v937 = vmul.f32 %v929, %v908
      %v938 = vmul.f32 %v930, %v910
      %v939 = vmul.f32 %v931, %v912
      %v940 = vmul.f32 %v932, %v914
      %v941 = vmul.f32 %v933, %v916
      %v942 = vmul.f32 %v934, %v918
      %v943 = vadd.f32 %v935, 1.4214138
      %v944 = vadd.f32 %v936, 1.4214138
      %v945 = vadd.f32 %v937, 1.4214138
      %v946 = vadd.f32 %v938, 1.4214138
      %v947 = vadd.f32 %v939, 1.4214138
      %v948 = vadd.f32 %v940, 1.4214138
      %v949 = vadd.f32 %v941, 1.4214138
      %v950 = vadd.f32 %v942, 1.4214138
      %v951 = vmul.f32 %v943, %v904
      %v952 = vmul.f32 %v944, %v906
      %v953 = vmul.f32 %v945, %v908
      %v954 = vmul.f32 %v946, %v910
      %v955 = vmul.f32 %v947, %v912
      %v956 = vmul.f32 %v948, %v914
      %v957 = vmul.f32 %v949, %v916
      %v958 = vmul.f32 %v950, %v918
      %v959 = vadd.f32 %v951, -0.28449672
      %v960 = vadd.f32 %v952, -0.28449672
      %v961 = vadd.f32 %v953, -0.28449672
      %v962 = vadd.f32 %v954, -0.28449672
      %v963 = vadd.f32 %v955, -0.28449672
      %v964 = vadd.f32 %v956, -0.28449672
      %v965 = vadd.f32 %v957, -0.28449672
      %v966 = vadd.f32 %v958, -0.28449672
      %v967 = vmul.f32 %v959, %v904
      %v968 = vmul.f32 %v960, %v906
      %v969 = vmul.f32 %v961, %v908
      %v970 = vmul.f32 %v962, %v910
      %v971 = vmul.f32 %v963, %v912
      %v972 = vmul.f32 %v964, %v914
      %v973 = vmul.f32 %v965, %v916
      %v974 = vmul.f32 %v966, %v918
      %v975 = vadd.f32 %v967, 0.2548296
      %v976 = vadd.f32 %v968, 0.2548296
      %v977 = vadd.f32 %v969, 0.2548296
      %v978 = vadd.f32 %v970, 0.2548296
      %v979 = vadd.f32 %v971, 0.2548296
      %v980 = vadd.f32 %v972, 0.2548296
      %v981 = vadd.f32 %v973, 0.2548296
      %v982 = vadd.f32 %v974, 0.2548296
      %v983 = vmul.f32 %v975, %v904
      %v984 = vmul.f32 %v976, %v906
      %v985 = vmul.f32 %v977, %v908
      %v986 = vmul.f32 %v978, %v910
      %v987 = vmul.f32 %v979, %v912
      %v988 = vmul.f32 %v980, %v914
      %v989 = vmul.f32 %v981, %v916
      %v990 = vmul.f32 %v982, %v918
      %v991 = vsub.f32 0.0, %v879
      %v992 = vsub.f32 0.0, %v880
      %v993 = vsub.f32 0.0, %v881
      %v994 = vsub.f32 0.0, %v882
      %v995 = vsub.f32 0.0, %v883
      %v996 = vsub.f32 0.0, %v884
      %v997 = vsub.f32 0.0, %v885
      %v998 = vsub.f32 0.0, %v886
      %v999 = vmul.f32 %v991, %v879
      %v1000 = vmul.f32 %v992, %v880
      %v1001 = vmul.f32 %v993, %v881
      %v1002 = vmul.f32 %v994, %v882
      %v1003 = vmul.f32 %v995, %v883
      %v1004 = vmul.f32 %v996, %v884
      %v1005 = vmul.f32 %v997, %v885
      %v1006 = vmul.f32 %v998, %v886
      %v1007 = vmul.f32 %v999, 1.442695
      %v1008 = vpow.pop %v1007
      %v1009 = vmul.f32 %v1000, 1.442695
      %v1010 = vpow.pop %v1009
      %v1011 = vmul.f32 %v1001, 1.442695
      %v1012 = vpow.pop %v1011
      %v1013 = vmul.f32 %v1002, 1.442695
      %v1014 = vpow.pop %v1013
      %v1015 = vmul.f32 %v1003, 1.442695
      %v1016 = vpow.pop %v1015
      %v1017 = vmul.f32 %v1004, 1.442695
      %v1018 = vpow.pop %v1017
      %v1019 = vmul.f32 %v1005, 1.442695
      %v1020 = vpow.pop %v1019
      %v1021 = vmul.f32 %v1006, 1.442695
      %v1022 = vpow.pop %v1021
      %v1023 = vmul.f32 %v983, %v1008
      %v1024 = vmul.f32 %v984, %v1010
      %v1025 = vmul.f32 %v985, %v1012
      %v1026 = vmul.f32 %v986, %v1014
      %v1027 = vmul.f32 %v987, %v1016
      %v1028 = vmul.f32 %v988, %v1018
      %v1029 = vmul.f32 %v989, %v1020
      %v1030 = vmul.f32 %v990, %v1022
      %v1031 = vsub.f32 1.0, %v1023
      %v1032 = vsub.f32 1.0, %v1024
      %v1033 = vsub.f32 1.0, %v1025
      %v1034 = vsub.f32 1.0, %v1026
      %v1035 = vsub.f32 1.0, %v1027
      %v1036 = vsub.f32 1.0, %v1028
      %v1037 = vsub.f32 1.0, %v1029
      %v1038 = vsub.f32 1.0, %v1030
      %vm1039 = vcmp.ge.f32.partialorder %v871, 0.0
      %vm1040 = vcmp.ge.f32.partialorder %v872, 0.0
      %vm1041 = vcmp.ge.f32.partialorder %v873, 0.0
      %vm1042 = vcmp.ge.f32.partialorder %v874, 0.0
      %vm1043 = vcmp.ge.f32.partialorder %v875, 0.0
      %vm1044 = vcmp.ge.f32.partialorder %v876, 0.0
      %vm1045 = vcmp.ge.f32.partialorder %v877, 0.0
      %vm1046 = vcmp.ge.f32.partialorder %v878, 0.0
      %v1047 = vsub.f32 0.0, %v1031
      %v1048 = vsub.f32 0.0, %v1032
      %v1049 = vsub.f32 0.0, %v1033
      %v1050 = vsub.f32 0.0, %v1034
      %v1051 = vsub.f32 0.0, %v1035
      %v1052 = vsub.f32 0.0, %v1036
      %v1053 = vsub.f32 0.0, %v1037
      %v1054 = vsub.f32 0.0, %v1038
      %v1055 = vsel %vm1039, %v1031, %v1047
      %v1056 = vsel %vm1040, %v1032, %v1048
      %v1057 = vsel %vm1041, %v1033, %v1049
      %v1058 = vsel %vm1042, %v1034, %v1050
      %v1059 = vsel %vm1043, %v1035, %v1051
      %v1060 = vsel %vm1044, %v1036, %v1052
      %v1061 = vsel %vm1045, %v1037, %v1053
      %v1062 = vsel %vm1046, %v1038, %v1054
      %v1063 = vadd.f32 %v1055, 1.0
      %v1064 = vadd.f32 %v1056, 1.0
      %v1065 = vadd.f32 %v1057, 1.0
      %v1066 = vadd.f32 %v1058, 1.0
      %v1067 = vadd.f32 %v1059, 1.0
      %v1068 = vadd.f32 %v1060, 1.0
      %v1069 = vadd.f32 %v1061, 1.0
      %v1070 = vadd.f32 %v1062, 1.0
      %v1071 = vmul.f32 %v863, %v1063
      %v1072 = vmul.f32 %v864, %v1064
      %v1073 = vmul.f32 %v865, %v1065
      %v1074 = vmul.f32 %v866, %v1066
      %v1075 = vmul.f32 %v867, %v1067
      %v1076 = vmul.f32 %v868, %v1068
      %v1077 = vmul.f32 %v869, %v1069
      %v1078 = vmul.f32 %v870, %v1070
      %v1079 = vld [vmem:[%s5] sm:$0x1]
      %v1081 = vlaneseq
      %v1082 = vshrl.u32 %v1081, 7
      %v1083 = vsub.s32 0, %v1082
      %v1084 = vrot.slane %v1079, %v1083
      %v1086 = vmul.f32 %v1071, %v1084
      %v1087 = vmul.f32 %v1072, %v1084
      %v1088 = vmul.f32 %v1073, %v1084
      %v1089 = vmul.f32 %v1074, %v1084
      %v1090 = vmul.f32 %v1075, %v1084
      %v1091 = vmul.f32 %v1076, %v1084
      %v1092 = vmul.f32 %v1077, %v1084
      %v1093 = vmul.f32 %v1078, %v1084
      %v1094 = vld [vmem:[%s6] sm:$0x1]
      %v1096 = vlaneseq
      %v1097 = vshrl.u32 %v1096, 7
      %v1098 = vsub.s32 0, %v1097
      %v1099 = vrot.slane %v1094, %v1098
      %v1101 = vadd.f32 %v1086, %v1099
      %v1102 = vadd.f32 %v1087, %v1099
      %v1103 = vadd.f32 %v1088, %v1099
      %v1104 = vadd.f32 %v1089, %v1099
      %v1105 = vadd.f32 %v1090, %v1099
      %v1106 = vadd.f32 %v1091, %v1099
      %v1107 = vadd.f32 %v1092, %v1099
      %v1108 = vadd.f32 %v1093, %v1099
      %1109 = vst.msk [vmem:[#allocation2] sm:$0xff] %vm563, 0.0
      %1110 = vst.msk [vmem:[#allocation2 + $0x8] sm:$0x3] %vm565, 0.0
      %1111 = vst.msk [vmem:[#allocation2 + $0x10] sm:$0xff] %vm563, 0.0
      %1112 = vst.msk [vmem:[#allocation2 + $0x18] sm:$0x3] %vm565, 0.0
      %1113 = vst.msk [vmem:[#allocation2 + $0x20] sm:$0xff] %vm563, 0.0
      %1114 = vst.msk [vmem:[#allocation2 + $0x28] sm:$0x3] %vm565, 0.0
      %1115 = vst.msk [vmem:[#allocation2 + $0x30] sm:$0xff] %vm563, 0.0
      %1116 = vst.msk [vmem:[#allocation2 + $0x38] sm:$0x3] %vm565, 0.0
      %1117 = vst.msk [vmem:[#allocation2 + $0x40] sm:$0xff] %vm563, 0.0
      %1118 = vst.msk [vmem:[#allocation2 + $0x48] sm:$0x3] %vm565, 0.0
      %1119 = vst.msk [vmem:[#allocation2 + $0x50] sm:$0xff] %vm563, 0.0
      %1120 = vst.msk [vmem:[#allocation2 + $0x58] sm:$0x3] %vm565, 0.0
      %1121 = vst.msk [vmem:[#allocation2 + $0x60] sm:$0xff] %vm563, 0.0
      %1122 = vst.msk [vmem:[#allocation2 + $0x68] sm:$0x3] %vm565, 0.0
      %1123 = vst.msk [vmem:[#allocation2 + $0x70] sm:$0xff] %vm563, 0.0
      %1124 = vst.msk [vmem:[#allocation2 + $0x78] sm:$0x3] %vm565, 0.0
      %1125 = vst.msk [vmem:[#allocation2 + $0x80] sm:$0xff] %vm563, 0.0
      %1126 = vst.msk [vmem:[#allocation2 + $0x88] sm:$0x3] %vm565, 0.0
      %1127 = vst.msk [vmem:[#allocation2 + $0x90] sm:$0xff] %vm563, 0.0
      %1128 = vst.msk [vmem:[#allocation2 + $0x98] sm:$0x3] %vm565, 0.0
      %1129 = vst.msk [vmem:[%s585 + $0x1] sm:$0xff] %vm563, %v1101
      %1130 = vst.msk [vmem:[%s585 + $0x11] sm:$0xff] %vm563, %v1102
      %1131 = vst.msk [vmem:[%s585 + $0x21] sm:$0xff] %vm563, %v1103
      %1132 = vst.msk [vmem:[%s585 + $0x31] sm:$0xff] %vm563, %v1104
      %1133 = vst.msk [vmem:[%s585 + $0x41] sm:$0xff] %vm563, %v1105
      %1134 = vst.msk [vmem:[%s585 + $0x51] sm:$0xff] %vm563, %v1106
      %1135 = vst.msk [vmem:[%s585 + $0x61] sm:$0xff] %vm563, %v1107
      %1136 = vst.msk [vmem:[%s585 + $0x71] sm:$0xff] %vm563, %v1108
      %v1137 = vld [vmem:[#allocation2] sm:$0xff]
      %v1138 = vld [vmem:[#allocation2 + $0x10] sm:$0xff]
      %v1139 = vld [vmem:[#allocation2 + $0x20] sm:$0xff]
      %v1140 = vld [vmem:[#allocation2 + $0x30] sm:$0xff]
      %v1141 = vld [vmem:[#allocation2 + $0x40] sm:$0xff]
      %v1142 = vld [vmem:[#allocation2 + $0x50] sm:$0xff]
      %v1143 = vld [vmem:[#allocation2 + $0x60] sm:$0xff]
      %v1144 = vld [vmem:[#allocation2 + $0x70] sm:$0xff]
      %v1145 = vld [vmem:[%s7] sm:$0x1]
      %v1146 = vlaneseq
      %v1147 = vshrl.u32 %v1146, 7
      %v1148 = vsub.s32 0, %v1147
      %v1149 = vrot.slane %v1145, %v1148
      %v1150 = vmul.f32 %v1137, %v1149
      %v1151 = vmul.f32 %v1138, %v1149
      %v1152 = vmul.f32 %v1139, %v1149
      %v1153 = vmul.f32 %v1140, %v1149
      %v1154 = vmul.f32 %v1141, %v1149
      %v1155 = vmul.f32 %v1142, %v1149
      %v1156 = vmul.f32 %v1143, %v1149
      %v1157 = vmul.f32 %v1144, %v1149
      %v1158 = vld [vmem:[#allocation2 + $0x1] sm:$0xff]
      %v1159 = vld [vmem:[#allocation2 + $0x11] sm:$0xff]
      %v1160 = vld [vmem:[#allocation2 + $0x21] sm:$0xff]
      %v1161 = vld [vmem:[#allocation2 + $0x31] sm:$0xff]
      %v1162 = vld [vmem:[#allocation2 + $0x41] sm:$0xff]
      %v1163 = vld [vmem:[#allocation2 + $0x51] sm:$0xff]
      %v1164 = vld [vmem:[#allocation2 + $0x61] sm:$0xff]
      %v1165 = vld [vmem:[#allocation2 + $0x71] sm:$0xff]
      %v1166 = vld [vmem:[%s7 + $0x1] sm:$0x1]
      %v1167 = vlaneseq
      %v1168 = vshrl.u32 %v1167, 7
      %v1169 = vsub.s32 0, %v1168
      %v1170 = vrot.slane %v1166, %v1169
      %v1171 = vmul.f32 %v1158, %v1170
      %v1172 = vmul.f32 %v1159, %v1170
      %v1173 = vmul.f32 %v1160, %v1170
      %v1174 = vmul.f32 %v1161, %v1170
      %v1175 = vmul.f32 %v1162, %v1170
      %v1176 = vmul.f32 %v1163, %v1170
      %v1177 = vmul.f32 %v1164, %v1170
      %v1178 = vmul.f32 %v1165, %v1170
      %v1179 = vadd.f32 %v1150, %v1171
      %v1180 = vadd.f32 %v1151, %v1172
      %v1181 = vadd.f32 %v1152, %v1173
      %v1182 = vadd.f32 %v1153, %v1174
      %v1183 = vadd.f32 %v1154, %v1175
      %v1184 = vadd.f32 %v1155, %v1176
      %v1185 = vadd.f32 %v1156, %v1177
      %v1186 = vadd.f32 %v1157, %v1178
      %v1187 = vld [vmem:[#allocation2 + $0x2] sm:$0xff]
      %v1188 = vld [vmem:[#allocation2 + $0x12] sm:$0xff]
      %v1189 = vld [vmem:[#allocation2 + $0x22] sm:$0xff]
      %v1190 = vld [vmem:[#allocation2 + $0x32] sm:$0xff]
      %v1191 = vld [vmem:[#allocation2 + $0x42] sm:$0xff]
      %v1192 = vld [vmem:[#allocation2 + $0x52] sm:$0xff]
      %v1193 = vld [vmem:[#allocation2 + $0x62] sm:$0xff]
      %v1194 = vld [vmem:[#allocation2 + $0x72] sm:$0xff]
      %v1195 = vld [vmem:[%s7 + $0x2] sm:$0x1]
      %v1196 = vlaneseq
      %v1197 = vshrl.u32 %v1196, 7
      %v1198 = vsub.s32 0, %v1197
      %v1199 = vrot.slane %v1195, %v1198
      %v1200 = vmul.f32 %v1187, %v1199
      %v1201 = vmul.f32 %v1188, %v1199
      %v1202 = vmul.f32 %v1189, %v1199
      %v1203 = vmul.f32 %v1190, %v1199
      %v1204 = vmul.f32 %v1191, %v1199
      %v1205 = vmul.f32 %v1192, %v1199
      %v1206 = vmul.f32 %v1193, %v1199
      %v1207 = vmul.f32 %v1194, %v1199
      %v1208 = vadd.f32 %v1179, %v1200
      %v1209 = vadd.f32 %v1180, %v1201
      %v1210 = vadd.f32 %v1181, %v1202
      %v1211 = vadd.f32 %v1182, %v1203
      %v1212 = vadd.f32 %v1183, %v1204
      %v1213 = vadd.f32 %v1184, %v1205
      %v1214 = vadd.f32 %v1185, %v1206
      %v1215 = vadd.f32 %v1186, %v1207
      %v1216 = vld [vmem:[%s585] sm:$0xff]
      %v1217 = vld [vmem:[%s585 + $0x10] sm:$0xff]
      %v1218 = vld [vmem:[%s585 + $0x20] sm:$0xff]
      %v1219 = vld [vmem:[%s585 + $0x30] sm:$0xff]
      %v1220 = vld [vmem:[%s585 + $0x40] sm:$0xff]
      %v1221 = vld [vmem:[%s585 + $0x50] sm:$0xff]
      %v1222 = vld [vmem:[%s585 + $0x60] sm:$0xff]
      %v1223 = vld [vmem:[%s585 + $0x70] sm:$0xff]
      %v1224 = vld [vmem:[%s7 + $0x3] sm:$0x1]
      %v1225 = vlaneseq
      %v1226 = vshrl.u32 %v1225, 7
      %v1227 = vsub.s32 0, %v1226
      %v1228 = vrot.slane %v1224, %v1227
      %v1229 = vmul.f32 %v1216, %v1228
      %v1230 = vmul.f32 %v1217, %v1228
      %v1231 = vmul.f32 %v1218, %v1228
      %v1232 = vmul.f32 %v1219, %v1228
      %v1233 = vmul.f32 %v1220, %v1228
      %v1234 = vmul.f32 %v1221, %v1228
      %v1235 = vmul.f32 %v1222, %v1228
      %v1236 = vmul.f32 %v1223, %v1228
      %v1237 = vadd.f32 %v1208, %v1229
      %v1238 = vadd.f32 %v1209, %v1230
      %v1239 = vadd.f32 %v1210, %v1231
      %v1240 = vadd.f32 %v1211, %v1232
      %v1241 = vadd.f32 %v1212, %v1233
      %v1242 = vadd.f32 %v1213, %v1234
      %v1243 = vadd.f32 %v1214, %v1235
      %v1244 = vadd.f32 %v1215, %v1236
      %v1245 = vld [vmem:[%s585 + $0x1] sm:$0xff]
      %v1246 = vld [vmem:[%s585 + $0x11] sm:$0xff]
      %v1247 = vld [vmem:[%s585 + $0x21] sm:$0xff]
      %v1248 = vld [vmem:[%s585 + $0x31] sm:$0xff]
      %v1249 = vld [vmem:[%s585 + $0x41] sm:$0xff]
      %v1250 = vld [vmem:[%s585 + $0x51] sm:$0xff]
      %v1251 = vld [vmem:[%s585 + $0x61] sm:$0xff]
      %v1252 = vld [vmem:[%s585 + $0x71] sm:$0xff]
      %v1253 = vld [vmem:[%s7 + $0x4] sm:$0x1]
      %v1254 = vlaneseq
      %v1255 = vshrl.u32 %v1254, 7
      %v1256 = vsub.s32 0, %v1255
      %v1257 = vrot.slane %v1253, %v1256
      %v1258 = vmul.f32 %v1245, %v1257
      %v1259 = vmul.f32 %v1246, %v1257
      %v1260 = vmul.f32 %v1247, %v1257
      %v1261 = vmul.f32 %v1248, %v1257
      %v1262 = vmul.f32 %v1249, %v1257
      %v1263 = vmul.f32 %v1250, %v1257
      %v1264 = vmul.f32 %v1251, %v1257
      %v1265 = vmul.f32 %v1252, %v1257
      %v1266 = vadd.f32 %v1237, %v1258
      %v1267 = vadd.f32 %v1238, %v1259
      %v1268 = vadd.f32 %v1239, %v1260
      %v1269 = vadd.f32 %v1240, %v1261
      %v1270 = vadd.f32 %v1241, %v1262
      %v1271 = vadd.f32 %v1242, %v1263
      %v1272 = vadd.f32 %v1243, %v1264
      %v1273 = vadd.f32 %v1244, %v1265
      %v1274 = vld [vmem:[%s585 + $0x2] sm:$0xff]
      %v1275 = vld [vmem:[%s585 + $0x12] sm:$0xff]
      %v1276 = vld [vmem:[%s585 + $0x22] sm:$0xff]
      %v1277 = vld [vmem:[%s585 + $0x32] sm:$0xff]
      %v1278 = vld [vmem:[%s585 + $0x42] sm:$0xff]
      %v1279 = vld [vmem:[%s585 + $0x52] sm:$0xff]
      %v1280 = vld [vmem:[%s585 + $0x62] sm:$0xff]
      %v1281 = vld [vmem:[%s585 + $0x72] sm:$0xff]
      %v1282 = vld [vmem:[%s7 + $0x5] sm:$0x1]
      %v1283 = vlaneseq
      %v1284 = vshrl.u32 %v1283, 7
      %v1285 = vsub.s32 0, %v1284
      %v1286 = vrot.slane %v1282, %v1285
      %v1287 = vmul.f32 %v1274, %v1286
      %v1288 = vmul.f32 %v1275, %v1286
      %v1289 = vmul.f32 %v1276, %v1286
      %v1290 = vmul.f32 %v1277, %v1286
      %v1291 = vmul.f32 %v1278, %v1286
      %v1292 = vmul.f32 %v1279, %v1286
      %v1293 = vmul.f32 %v1280, %v1286
      %v1294 = vmul.f32 %v1281, %v1286
      %v1295 = vadd.f32 %v1266, %v1287
      %v1296 = vadd.f32 %v1267, %v1288
      %v1297 = vadd.f32 %v1268, %v1289
      %v1298 = vadd.f32 %v1269, %v1290
      %v1299 = vadd.f32 %v1270, %v1291
      %v1300 = vadd.f32 %v1271, %v1292
      %v1301 = vadd.f32 %v1272, %v1293
      %v1302 = vadd.f32 %v1273, %v1294
      %v1303 = vld [vmem:[%s760] sm:$0xff]
      %v1304 = vld [vmem:[%s760 + $0x10] sm:$0xff]
      %v1305 = vld [vmem:[%s760 + $0x20] sm:$0xff]
      %v1306 = vld [vmem:[%s760 + $0x30] sm:$0xff]
      %v1307 = vld [vmem:[%s760 + $0x40] sm:$0xff]
      %v1308 = vld [vmem:[%s760 + $0x50] sm:$0xff]
      %v1309 = vld [vmem:[%s760 + $0x60] sm:$0xff]
      %v1310 = vld [vmem:[%s760 + $0x70] sm:$0xff]
      %v1311 = vld [vmem:[%s7 + $0x6] sm:$0x1]
      %v1312 = vlaneseq
      %v1313 = vshrl.u32 %v1312, 7
      %v1314 = vsub.s32 0, %v1313
      %v1315 = vrot.slane %v1311, %v1314
      %v1316 = vmul.f32 %v1303, %v1315
      %v1317 = vmul.f32 %v1304, %v1315
      %v1318 = vmul.f32 %v1305, %v1315
      %v1319 = vmul.f32 %v1306, %v1315
      %v1320 = vmul.f32 %v1307, %v1315
      %v1321 = vmul.f32 %v1308, %v1315
      %v1322 = vmul.f32 %v1309, %v1315
      %v1323 = vmul.f32 %v1310, %v1315
      %v1324 = vadd.f32 %v1295, %v1316
      %v1325 = vadd.f32 %v1296, %v1317
      %v1326 = vadd.f32 %v1297, %v1318
      %v1327 = vadd.f32 %v1298, %v1319
      %v1328 = vadd.f32 %v1299, %v1320
      %v1329 = vadd.f32 %v1300, %v1321
      %v1330 = vadd.f32 %v1301, %v1322
      %v1331 = vadd.f32 %v1302, %v1323
      %v1332 = vld [vmem:[%s760 + $0x1] sm:$0xff]
      %v1333 = vld [vmem:[%s760 + $0x11] sm:$0xff]
      %v1334 = vld [vmem:[%s760 + $0x21] sm:$0xff]
      %v1335 = vld [vmem:[%s760 + $0x31] sm:$0xff]
      %v1336 = vld [vmem:[%s760 + $0x41] sm:$0xff]
      %v1337 = vld [vmem:[%s760 + $0x51] sm:$0xff]
      %v1338 = vld [vmem:[%s760 + $0x61] sm:$0xff]
      %v1339 = vld [vmem:[%s760 + $0x71] sm:$0xff]
      %v1340 = vld [vmem:[%s7 + $0x7] sm:$0x1]
      %v1341 = vlaneseq
      %v1342 = vshrl.u32 %v1341, 7
      %v1343 = vsub.s32 0, %v1342
      %v1344 = vrot.slane %v1340, %v1343
      %v1345 = vmul.f32 %v1332, %v1344
      %v1346 = vmul.f32 %v1333, %v1344
      %v1347 = vmul.f32 %v1334, %v1344
      %v1348 = vmul.f32 %v1335, %v1344
      %v1349 = vmul.f32 %v1336, %v1344
      %v1350 = vmul.f32 %v1337, %v1344
      %v1351 = vmul.f32 %v1338, %v1344
      %v1352 = vmul.f32 %v1339, %v1344
      %v1353 = vadd.f32 %v1324, %v1345
      %v1354 = vadd.f32 %v1325, %v1346
      %v1355 = vadd.f32 %v1326, %v1347
      %v1356 = vadd.f32 %v1327, %v1348
      %v1357 = vadd.f32 %v1328, %v1349
      %v1358 = vadd.f32 %v1329, %v1350
      %v1359 = vadd.f32 %v1330, %v1351
      %v1360 = vadd.f32 %v1331, %v1352
      %v1361 = vld [vmem:[%s760 + $0x2] sm:$0xff]
      %v1362 = vld [vmem:[%s760 + $0x12] sm:$0xff]
      %v1363 = vld [vmem:[%s760 + $0x22] sm:$0xff]
      %v1364 = vld [vmem:[%s760 + $0x32] sm:$0xff]
      %v1365 = vld [vmem:[%s760 + $0x42] sm:$0xff]
      %v1366 = vld [vmem:[%s760 + $0x52] sm:$0xff]
      %v1367 = vld [vmem:[%s760 + $0x62] sm:$0xff]
      %v1368 = vld [vmem:[%s760 + $0x72] sm:$0xff]
      %v1369 = vld [vmem:[%s7 + $0x8] sm:$0x1]
      %v1370 = vlaneseq
      %v1371 = vshrl.u32 %v1370, 7
      %v1372 = vsub.s32 0, %v1371
      %v1373 = vrot.slane %v1369, %v1372
      %v1374 = vmul.f32 %v1361, %v1373
      %v1375 = vmul.f32 %v1362, %v1373
      %v1376 = vmul.f32 %v1363, %v1373
      %v1377 = vmul.f32 %v1364, %v1373
      %v1378 = vmul.f32 %v1365, %v1373
      %v1379 = vmul.f32 %v1366, %v1373
      %v1380 = vmul.f32 %v1367, %v1373
      %v1381 = vmul.f32 %v1368, %v1373
      %v1382 = vadd.f32 %v1353, %v1374
      %v1383 = vadd.f32 %v1354, %v1375
      %v1384 = vadd.f32 %v1355, %v1376
      %v1385 = vadd.f32 %v1356, %v1377
      %v1386 = vadd.f32 %v1357, %v1378
      %v1387 = vadd.f32 %v1358, %v1379
      %v1388 = vadd.f32 %v1359, %v1380
      %v1389 = vadd.f32 %v1360, %v1381
      %v1390 = vld [vmem:[%s8] sm:$0x1]
      %v1392 = vlaneseq
      %v1393 = vshrl.u32 %v1392, 7
      %v1394 = vsub.s32 0, %v1393
      %v1395 = vrot.slane %v1390, %v1394
      %v1397 = vadd.f32 %v1382, %v1395
      %v1398 = vadd.f32 %v1383, %v1395
      %v1399 = vadd.f32 %v1384, %v1395
      %v1400 = vadd.f32 %v1385, %v1395
      %v1401 = vadd.f32 %v1386, %v1395
      %v1402 = vadd.f32 %v1387, %v1395
      %v1403 = vadd.f32 %v1388, %v1395
      %v1404 = vadd.f32 %v1389, %v1395
      %v1405 = vld [vmem:[%s9] sm:$0x1]
      %v1407 = vlaneseq
      %v1408 = vshrl.u32 %v1407, 7
      %v1409 = vsub.s32 0, %v1408
      %v1410 = vrot.slane %v1405, %v1409
      %v1412 = vmul.f32 %v1410, %v1397
      %v1413 = vmul.f32 %v1410, %v1398
      %v1414 = vmul.f32 %v1410, %v1399
      %v1415 = vmul.f32 %v1410, %v1400
      %v1416 = vmul.f32 %v1410, %v1401
      %v1417 = vmul.f32 %v1410, %v1402
      %v1418 = vmul.f32 %v1410, %v1403
      %v1419 = vmul.f32 %v1410, %v1404
      %v1420 = vadd.f32 %v1412, %v525
      %v1421 = vadd.f32 %v1413, %v530
      %v1422 = vadd.f32 %v1414, %v535
      %v1423 = vadd.f32 %v1415, %v540
      %v1424 = vadd.f32 %v1416, %v545
      %v1425 = vadd.f32 %v1417, %v550
      %v1426 = vadd.f32 %v1418, %v555
      %v1427 = vadd.f32 %v1419, %v560
      %v1428 = vld [vmem:[%s10] sm:$0xff]
      %v1429 = vld [vmem:[%s10 + $0x8] sm:$0xff]
      %v1430 = vld [vmem:[%s10 + $0x10] sm:$0xff]
      %v1431 = vld [vmem:[%s10 + $0x18] sm:$0xff]
      %v1432 = vld [vmem:[%s10 + $0x20] sm:$0xff]
      %v1433 = vld [vmem:[%s10 + $0x28] sm:$0xff]
      %v1434 = vld [vmem:[%s10 + $0x30] sm:$0xff]
      %v1435 = vld [vmem:[%s10 + $0x38] sm:$0xff]
      %v1436 = vld [vmem:[%s11] sm:$0x1]
      %v1438 = vlaneseq
      %v1439 = vshrl.u32 %v1438, 7
      %v1440 = vsub.s32 0, %v1439
      %v1441 = vrot.slane %v1436, %v1440
      %v1444 = vsel %vm563, %v1420, 0
      %v1447 = vsel %vm563, %v1421, 0
      %v1450 = vsel %vm563, %v1422, 0
      %v1453 = vsel %vm563, %v1423, 0
      %v1456 = vsel %vm563, %v1424, 0
      %v1459 = vsel %vm563, %v1425, 0
      %v1462 = vsel %vm563, %v1426, 0
      %v1465 = vsel %vm563, %v1427, 0
      %1467 = vmatprep.subr.mxu0 0.0
      %1468 = vmatpush1.msra.mxu0 %v1428
      %1469 = vmatprep.subr.mxu0 0.0
      %1470 = vmatpush1.msra.mxu0 %v1429
      %1471 = vmatprep.subr.mxu0 0.0
      %1472 = vmatpush1.msra.mxu0 %v1430
      %1473 = vmatprep.subr.mxu0 0.0
      %1474 = vmatpush1.msra.mxu0 %v1431
      %1475 = vmatprep.subr.mxu0 0.0
      %1476 = vmatpush1.msra.mxu0 %v1432
      %1477 = vmatprep.subr.mxu0 0.0
      %1478 = vmatpush1.msra.mxu0 %v1433
      %1479 = vmatprep.subr.mxu0 0.0
      %1480 = vmatpush1.msra.mxu0 %v1434
      %1481 = vmatprep.subr.mxu0 0.0
      %1482 = vmatpush1.msra.mxu0 %v1435
      %1483 = vmatprep.subr.mxu0 0.0
      %1484 = vmatpush1.msra.mxu0 0.0
      %1485 = vmatprep.subr.mxu0 0.0
      %1486 = vmatpush1.msra.mxu0 0.0
      %1487 = vmatprep.subr.mxu0 0.0
      %1488 = vmatpush1.msra.mxu0 0.0
      %1489 = vmatprep.subr.mxu0 0.0
      %1490 = vmatpush1.msra.mxu0 0.0
      %1491 = vmatprep.subr.mxu0 0.0
      %1492 = vmatpush1.msra.mxu0 0.0
      %1493 = vmatprep.subr.mxu0 0.0
      %1494 = vmatpush1.msra.mxu0 0.0
      %1495 = vmatprep.subr.mxu0 0.0
      %1496 = vmatpush1.msra.mxu0 0.0
      %1497 = vmatprep.subr.mxu0 0.0
      %1498 = vmatpush1.msra.mxu0 0.0
      %1499 = vmatprep.subr.mxu0 0.0
      %1500 = vmatpush1.msra.mxu0 0.0
      %1501 = vmatprep.subr.mxu0 0.0
      %1502 = vmatpush1.msra.mxu0 0.0
      %1503 = vmatprep.subr.mxu0 0.0
      %1504 = vmatpush1.msra.mxu0 0.0
      %1505 = vmatprep.subr.mxu0 0.0
      %1506 = vmatpush1.msra.mxu0 0.0
      %1507 = vmatprep.subr.mxu0 0.0
      %1508 = vmatpush1.msra.mxu0 0.0
      %1509 = vmatprep.subr.mxu0 0.0
      %1510 = vmatpush1.msra.mxu0 0.0
      %1511 = vmatprep.subr.mxu0 0.0
      %1512 = vmatpush1.msra.mxu0 0.0
      %1513 = vmatprep.subr.mxu0 0.0
      %1514 = vmatpush1.msra.mxu0 0.0
      %1515 = vmatprep.subr.mxu0 0.0
      %1516 = vmatpush1.msra.mxu0 0.0
      %1517 = vmatprep.subr.mxu0 0.0
      %1518 = vmatpush1.msra.mxu0 0.0
      %1519 = vmatprep.subr.mxu0 0.0
      %1520 = vmatpush1.msra.mxu0 0.0
      %1521 = vmatprep.subr.mxu0 0.0
      %1522 = vmatpush1.msra.mxu0 0.0
      %1523 = vmatprep.subr.mxu0 0.0
      %1524 = vmatpush1.msra.mxu0 0.0
      %1525 = vmatprep.subr.mxu0 0.0
      %1526 = vmatpush1.msra.mxu0 0.0
      %1527 = vmatprep.subr.mxu0 0.0
      %1528 = vmatpush1.msra.mxu0 0.0
      %1529 = vmatprep.subr.mxu0 0.0
      %1530 = vmatpush1.msra.mxu0 0.0
      %1531 = vmatprep.mubr.f32.mxu0 0.0
      %1532 = vmatmul.mubr.f32.gmra.mrb[0].mxu0 %v1444
      %v1533 = vpop.f32.mrb[0].mxu0
      %v1534 = vadd.f32 %v1441, %v1533
      %v1535 = vpop.f32.mrb[0].mxu0
      %1536 = vmatprep.mubr.f32.mxu0 0.0
      %1537 = vmatmul.mubr.f32.gmra.mrb[0].mxu0 %v1447
      %v1538 = vpop.f32.mrb[0].mxu0
      %v1539 = vadd.f32 %v1441, %v1538
      %v1540 = vpop.f32.mrb[0].mxu0
      %1541 = vmatprep.mubr.f32.mxu0 0.0
      %1542 = vmatmul.mubr.f32.gmra.mrb[0].mxu0 %v1450
      %v1543 = vpop.f32.mrb[0].mxu0
      %v1544 = vadd.f32 %v1441, %v1543
      %v1545 = vpop.f32.mrb[0].mxu0
      %1546 = vmatprep.mubr.f32.mxu0 0.0
      %1547 = vmatmul.mubr.f32.gmra.mrb[0].mxu0 %v1453
      %v1548 = vpop.f32.mrb[0].mxu0
      %v1549 = vadd.f32 %v1441, %v1548
      %v1550 = vpop.f32.mrb[0].mxu0
      %1551 = vmatprep.mubr.f32.mxu0 0.0
      %1552 = vmatmul.mubr.f32.gmra.mrb[0].mxu0 %v1456
      %v1553 = vpop.f32.mrb[0].mxu0
      %v1554 = vadd.f32 %v1441, %v1553
      %v1555 = vpop.f32.mrb[0].mxu0
      %1556 = vmatprep.mubr.f32.mxu0 0.0
      %1557 = vmatmul.mubr.f32.gmra.mrb[0].mxu0 %v1459
      %v1558 = vpop.f32.mrb[0].mxu0
      %v1559 = vadd.f32 %v1441, %v1558
      %v1560 = vpop.f32.mrb[0].mxu0
      %1561 = vmatprep.mubr.f32.mxu0 0.0
      %1562 = vmatmul.mubr.f32.gmra.mrb[0].mxu0 %v1462
      %v1563 = vpop.f32.mrb[0].mxu0
      %v1564 = vadd.f32 %v1441, %v1563
      %v1565 = vpop.f32.mrb[0].mxu0
      %1566 = vmatprep.mubr.f32.mxu0 0.0
      %1567 = vmatmul.mubr.f32.gmra.mrb[0].mxu0 %v1465
      %v1568 = vpop.f32.mrb[0].mxu0
      %v1569 = vadd.f32 %v1441, %v1568
      %v1570 = vpop.f32.mrb[0].mxu0
      %1571 = vdwg.mxu0
      %1572 = vst.msk [vmem:[%s413] sm:$0xff] %vm433, %v1534
      %1573 = vst.msk [vmem:[%s413 + $0x8] sm:$0xff] %vm433, %v1539
      %1574 = vst.msk [vmem:[%s413 + $0x10] sm:$0xff] %vm433, %v1544
      %1575 = vst.msk [vmem:[%s413 + $0x18] sm:$0xff] %vm433, %v1549
      %1576 = vst.msk [vmem:[%s413 + $0x20] sm:$0xff] %vm433, %v1554
      %1577 = vst.msk [vmem:[%s413 + $0x28] sm:$0xff] %vm433, %v1559
      %1578 = vst.msk [vmem:[%s413 + $0x30] sm:$0xff] %vm433, %v1564
      %1579 = vst.msk [vmem:[%s413 + $0x38] sm:$0xff] %vm433, %v1569
      %p1580 = scmp.lt.s32.totalorder %s23, 1
      %s1581 = scalar_select %p1580, %s23, 1
      %s1582 = smul.addr %s1581, 8
      %s1583 = smul.addr %s1582, 8
      %s1584 = scalar_lea.vmem %s12, %s1583
      // Predicated region
      $region69: #{mlp_forward.1} parent=67 // pred_check
        %p1585 = pneg %p298
      $region70: #{mlp_forward.1} parent=67 // pred_check_branch
        %1587 = sbr.rel (%p1585) target = $region72
      $region71: #{mlp_forward.1} parent=67 // pred_region
        _
      $region72: #{mlp_forward.1} parent=67 // pred_fallthru
        _
    $region68: #{mlp_forward.1} parent=5 // pred_fallthru
      _
    %p1588 = scmp.le.s32.totalorder 2, %s18
    // Predicated region
    $region73: #{mlp_forward.1} parent=5 // pred_check
      %p1589 = pneg %p1588
    $region74: #{mlp_forward.1} parent=5 // pred_check_branch
      %1591 = sbr.rel (%p1589) target = $region76
    $region75: #{mlp_forward.1} parent=5 // pred_region
      %s1592 = ssub.s32 %s18, 2
      // Predicated region
      $region77: #{mlp_forward.1} parent=75 // pred_check
        %p1593 = pneg %p304
      $region78: #{mlp_forward.1} parent=75 // pred_check_branch
        %1595 = sbr.rel (%p1593) target = $region80
      $region79: #{mlp_forward.1} parent=75 // pred_region
        %p1596 = scmp.lt.s32.totalorder %s24, 1
        %s1597 = scalar_select %p1596, %s24, 1
        %s1598 = smul.addr %s1597, 8
        %s1599 = smul.addr %s1598, 8
        %s1600 = scalar_lea.vmem %s12, %s1599
      $region80: #{mlp_forward.1} parent=75 // pred_fallthru
        _
    $region76: #{mlp_forward.1} parent=5 // pred_fallthru
      _
  $region6: #{mlp_forward.1} parent=0 // loop_footer
    %s22 = sadd.s32 1, %s18
  $region7: #{mlp_forward.1} parent=0 // loop_footer_branch
    %17 = sbr.rel target = $region3
  $region8: #{mlp_forward.1} parent=0 // loop_exit
    _

</llo_original>
